<compile_context>
chip_gen: v7x
topology: tpu7x:2x2x1
jax: 0.10.0
libtpu: 0.0.40
codegen_flags: <defaults>
</compile_context>

<pallas_src>
import functools
import math

import jax
import jax.numpy as jnp
from jax.experimental import pallas as pl
from jax.experimental.pallas import tpu as pltpu


# ----------------------------------------------------------------------------
# Fused self-attention core:  softmax(X X^T / temperature) X   (Q = K = V = X)
# ----------------------------------------------------------------------------
def _self_attn_kernel(q_ref, kv_ref, ctx_ref, attn_ref,
                      m_scr, l_scr, acc_scr, s_scr, *, scale):
    """Flash-style (online-softmax) kernel, key axis tiled into the grid.

    Grid = (batch, query-tile, key-tile), key axis last / "arbitrary".
      q_ref   : (block_q, D)   bf16, resident across the key axis
      kv_ref  : (block_k, D)   bf16, streamed; used as BOTH K and V (Q=K=V)
      ctx_ref : (block_q, D)   f32 output, written at the last key step
      attn_ref: (block_q, Lk)  bf16 weights output, written at the last step
      m/l/acc : online-softmax running state (f32 scratch)
      s_scr   : (block_q, Lk)  f32 raw scores, kept resident so the returned
                weights are the exact softmax (no per-block rescale error)
    """
    kb = pl.program_id(2)
    n_k = pl.num_programs(2)
    block_k = kv_ref.shape[0]
    l_total = s_scr.shape[-1]

    @pl.when(kb == 0)
    def _():
        m_scr[...] = jnp.full(m_scr.shape, -jnp.inf, m_scr.dtype)
        l_scr[...] = jnp.zeros(l_scr.shape, l_scr.dtype)
        acc_scr[...] = jnp.zeros(acc_scr.shape, acc_scr.dtype)

    q = q_ref[...]                       # (block_q, D)   bf16
    kv = kv_ref[...]                     # (block_k, D)   bf16

    # scores = Q @ K^T: contraction over the feature axis (no materialized
    # transpose); MXU consumes bf16, accumulates f32.  The 1/temperature scale
    # is applied to the f32 scores (exact; VPU mul hidden under the MXU).
    s = jax.lax.dot_general(
        q, kv, dimension_numbers=(((1,), (1,)), ((), ())),
        preferred_element_type=jnp.float32) * scale      # (block_q, block_k) f32

    # Stash raw scores so the final weights are the exact softmax.
    if block_k == l_total:               # static: single key block
        s_scr[...] = s
    else:
        start = pl.multiple_of(kb * block_k, block_k)    # block_k % 128 == 0
        s_scr[:, pl.ds(start, block_k)] = s

    # Online softmax update (f32 math).
    m_prev = m_scr[...]
    m_new = jnp.maximum(m_prev, jnp.max(s, axis=-1, keepdims=True))
    alpha = jnp.exp(m_prev - m_new)                      # == 0 on first step
    p = jnp.exp(s - m_new)
    l_scr[...] = alpha * l_scr[...] + jnp.sum(p, axis=-1, keepdims=True)
    acc_scr[...] = alpha * acc_scr[...] + jax.lax.dot_general(
        p.astype(kv.dtype), kv, dimension_numbers=(((1,), (0,)), ((), ())),
        preferred_element_type=jnp.float32)
    m_scr[...] = m_new

    @pl.when(kb == n_k - 1)
    def _():
        l = l_scr[...]
        inv = pl.reciprocal(l, approx=True)              # EUP slot
        inv = inv * (2.0 - l * inv)                      # one Newton step -> ~exact
        ctx_ref[...] = (acc_scr[...] * inv).astype(ctx_ref.dtype)
        attn_ref[...] = (jnp.exp(s_scr[...] - m_scr[...]) * inv
                         ).astype(attn_ref.dtype)


# ----------------------------------------------------------------------------
# VMEM / block-size heuristics (generation aware)
# ----------------------------------------------------------------------------
_DEFAULT_SCOPED_VMEM = 16 * 2**20     # v5e's default scoped VMEM (smallest gen)


def _vmem_budget_bytes():
    """Conservative scoped-VMEM cap: <= 3/4 of physical, never above 48 MiB
    (leaves headroom on v7x's 64 MiB for Mosaic internal scratch)."""
    phys = 64 * 2**20
    try:
        phys = int(pltpu.get_tpu_info().vmem_capacity_bytes)
    except Exception:
        pass
    return min(48 * 2**20, (phys * 3) // 4)


def _vmem_estimate(bq, bk, l, d, in_isz, ctx_isz, w_isz):
    dbuf = 2                                             # BlockSpec double-buffering
    q_b = dbuf * bq * d * in_isz
    kv_b = dbuf * bk * d * in_isz                        # single deduped K/V stream
    ctx_b = dbuf * bq * d * ctx_isz
    w_b = dbuf * bq * l * w_isz
    scratch = bq * l * 4 + bq * d * 4 + 2 * bq * 4       # s_scr, acc, m, l
    live_tmp = 3 * bq * bk * 4                           # f32 s / exp / p temporaries
    return q_b + kv_b + ctx_b + w_b + scratch + live_tmp


def _choose_blocks(l, d, in_isz, ctx_isz, w_isz, budget, block_q, block_k):
    kind = ""
    try:
        kind = jax.devices()[0].device_kind.lower()
    except Exception:
        pass
    # v5e: 4x128 MXU + single vst slot -> cap block_q at 128.  On v6e/v7x a
    # 256-row query tile already fills the 2x256 MXU M dimension.
    max_bq = 128 if "v5" in kind else 256
    q_cands = ([block_q] if block_q is not None else
               ([c for c in (256, 128) if c <= max_bq and l % c == 0] or [l]))
    k_cands = ([block_k] if block_k is not None else
               ([c for c in (512, 256, 128) if l % c == 0] or [l]))
    for bq in q_cands:                                   # largest first
        for bk in k_cands:
            if _vmem_estimate(bq, bk, l, d, in_isz, ctx_isz, w_isz) * 5 // 4 <= budget:
                return bq, bk
    return q_cands[-1], k_cands[-1]


# ----------------------------------------------------------------------------
# Wrapper: softmax(x @ x^T / temperature) @ x, per batch element
# ----------------------------------------------------------------------------
def self_attention(x, temperature, *, block_q=None, block_k=None,
                   weights_dtype=jnp.bfloat16):
    """Returns (ctx (B,L,D) f32, weights (B,L,L) weights_dtype) with Q=K=V=x."""
    B, L, D = x.shape

    # Feed the MXU bf16 operands; accumulation & softmax math stay f32 inside.
    x_lp = x.astype(jnp.bfloat16) if x.dtype == jnp.float32 else x
    in_isz = jnp.dtype(x_lp.dtype).itemsize
    ctx_dtype = jnp.float32
    ctx_isz = jnp.dtype(ctx_dtype).itemsize
    w_isz = jnp.dtype(weights_dtype).itemsize

    budget = _vmem_budget_bytes()
    bq, bk = _choose_blocks(L, D, in_isz, ctx_isz, w_isz, budget, block_q, block_k)
    assert L % bq == 0 and L % bk == 0, (L, bq, bk)
    n_q, n_k = L // bq, L // bk

    kernel = functools.partial(_self_attn_kernel, scale=1.0 / float(temperature))

    grid_spec = pltpu.PrefetchScalarGridSpec(
        num_scalar_prefetch=0,
        grid=(B, n_q, n_k),                       # key axis last ("arbitrary")
        in_specs=[
            # Q tile: resident across the key axis.
            pl.BlockSpec((None, bq, D), lambda b, i, k: (b, i, 0)),
            # Single K/V stream (same HBM array as Q): used as BOTH K and V.
            pl.BlockSpec((None, bk, D), lambda b, i, k: (b, k, 0)),
        ],
        out_specs=[
            pl.BlockSpec((None, bq, D), lambda b, i, k: (b, i, 0)),
            pl.BlockSpec((None, bq, L), lambda b, i, k: (b, i, 0)),
        ],
        scratch_shapes=[
            pltpu.VMEM((bq, 1), jnp.float32),     # running max
            pltpu.VMEM((bq, 1), jnp.float32),     # running denom
            pltpu.VMEM((bq, D), jnp.float32),     # context accumulator
            pltpu.VMEM((bq, L), jnp.float32),     # raw scores (exact weights)
        ],
    )

    out_shapes = (
        jax.ShapeDtypeStruct((B, L, D), ctx_dtype),       # context vectors
        jax.ShapeDtypeStruct((B, L, L), weights_dtype),   # attention weights
    )

    # Advisory cost estimate: per-array, dtype-correct byte counts.  The K/V
    # stream is re-read once per query tile.
    cost = pl.CostEstimate(
        flops=2 * B * L * L * (D + D),
        transcendentals=2 * B * L * L,
        bytes_accessed=int(B * L * D * in_isz * (1 + n_q)
                           + B * L * D * ctx_isz
                           + B * L * L * w_isz),
    )

    compiler_kwargs = dict(
        dimension_semantics=("parallel", "parallel", "arbitrary"))
    est = _vmem_estimate(bq, bk, L, D, in_isz, ctx_isz, w_isz)
    limit = est * 5 // 4
    if limit > _DEFAULT_SCOPED_VMEM:              # raise only when needed
        compiler_kwargs["vmem_limit_bytes"] = int(min(limit, budget))

    ctx, weights = pl.pallas_call(
        kernel,
        out_shape=out_shapes,
        grid_spec=grid_spec,
        compiler_params=pltpu.CompilerParams(**compiler_kwargs),
        cost_estimate=cost,
    )(x_lp, x_lp)                                 # same array -> Q spec + K/V spec
    return ctx, weights


# ----------------------------------------------------------------------------
# luong_gate_attention forward (inference mode)
# ----------------------------------------------------------------------------
def _mlp2(x, w1, b1, w2, b2):
    # Linear -> SELU -> Dropout(id) -> Linear -> SELU -> Dropout(id)
    x = jax.nn.selu(x @ w1.T + b1)
    return jax.nn.selu(x @ w2.T + b2)


def luong_gate_attention_forward(h, context, params, *, selfatt=False,
                                 block_q=None, block_k=None):
    """Matches luong_gate_attention.forward (after init_context(context))."""
    if selfatt:
        gamma_enc = _mlp2(context, params["enc_w1"], params["enc_b1"],
                          params["enc_w2"], params["enc_b2"])        # (B, L, H)
        c_t, weights = self_attention(gamma_enc, temperature=math.sqrt(512.0),
                                      block_q=block_q, block_k=block_k)
        out = _mlp2(jnp.concatenate([gamma_enc, c_t], axis=2),
                    params["out_w1"], params["out_b1"],
                    params["out_w2"], params["out_b2"])
        output = jnp.swapaxes(out + context, 0, 1)                   # (L, B, H)
    else:
        # Lq == 1 gate attention: HBM-bound streaming of `context` with a
        # 1-row query -> plain XLA matches/beats a Pallas kernel and fuses
        # with the surrounding MLPs (per perf review).
        gamma_h = _mlp2(h, params["in_w1"], params["in_b1"],
                        params["in_w2"], params["in_b2"])            # (B, H)
        scores = jnp.einsum("bld,bd->bl", context, gamma_h)
        weights = jax.nn.softmax(scores, axis=-1)                    # (B, L)
        c_t = jnp.einsum("bl,bld->bd", weights, context)             # (B, H)
        output = _mlp2(jnp.concatenate([h, c_t], axis=1),
                       params["out_w1"], params["out_b1"],
                       params["out_w2"], params["out_b2"])           # (B, H)
    return output, weights


# ----------------------------------------------------------------------------
# Pure-JAX reference (for the correctness check)
# ----------------------------------------------------------------------------
def _reference_forward(h, context, params, *, selfatt=False):
    if selfatt:
        gamma_enc = _mlp2(context, params["enc_w1"], params["enc_b1"],
                          params["enc_w2"], params["enc_b2"])
        s = jnp.einsum("bqd,bkd->bqk", gamma_enc, gamma_enc) / math.sqrt(512.0)
        w = jax.nn.softmax(s, axis=-1)
        c_t = jnp.einsum("bqk,bkd->bqd", w, gamma_enc)
        out = _mlp2(jnp.concatenate([gamma_enc, c_t], axis=2),
                    params["out_w1"], params["out_b1"],
                    params["out_w2"], params["out_b2"])
        return jnp.swapaxes(out + context, 0, 1), w
    gamma_h = _mlp2(h, params["in_w1"], params["in_b1"],
                    params["in_w2"], params["in_b2"])
    s = jnp.einsum("bld,bd->bl", context, gamma_h)
    w = jax.nn.softmax(s, axis=-1)
    c_t = jnp.einsum("bl,bld->bd", w, context)
    out = _mlp2(jnp.concatenate([h, c_t], axis=1),
                params["out_w1"], params["out_b1"],
                params["out_w2"], params["out_b2"])
    return out, w


def _init_params(key, hidden):
    def linear(k, out_f, in_f):
        kw, kb = jax.random.split(k)
        w = jax.random.normal(kw, (out_f, in_f), jnp.float32) / math.sqrt(in_f)
        b = 0.1 * jax.random.normal(kb, (out_f,), jnp.float32)
        return w, b

    keys = jax.random.split(key, 6)
    p = {}
    p["enc_w1"], p["enc_b1"] = linear(keys[0], hidden, hidden)
    p["enc_w2"], p["enc_b2"] = linear(keys[1], hidden, hidden)
    p["in_w1"], p["in_b1"] = linear(keys[2], hidden, hidden)
    p["in_w2"], p["in_b2"] = linear(keys[3], hidden, hidden)
    p["out_w1"], p["out_b1"] = linear(keys[4], hidden, 2 * hidden)
    p["out_w2"], p["out_b2"] = linear(keys[5], hidden, hidden)
    return p


if __name__ == "__main__":
    key = jax.random.PRNGKey(0)
    k_ctx, k_h, k_par = jax.random.split(key, 3)

    # Small but lane-aligned shapes: batch=2, seq=128, hidden=128.
    # (The module hardcodes a sqrt(512) temperature regardless of hidden size.)
    B, L, H = 2, 128, 128

    context = jax.random.normal(k_ctx, (B, L, H), dtype=jnp.float32)
    h = jax.random.normal(k_h, (B, H), dtype=jnp.float32)
    params = _init_params(k_par, H)

    # --- selfatt=True branch (Pallas kernel) ---------------------------------
    out_s, w_s = luong_gate_attention_forward(h, context, params, selfatt=True)
    jax.block_until_ready((out_s, w_s))
    ref_out_s, ref_w_s = _reference_forward(h, context, params, selfatt=True)
    assert out_s.shape == (L, B, H) and w_s.shape == (B, L, L)
    # Weights are <= 1 and accurate; output tolerance accounts for the bf16
    # MXU operands (f32 accumulation) and bf16 weights writeback.
    assert jnp.allclose(w_s.astype(jnp.float32), ref_w_s, atol=1e-2, rtol=1e-2)
    assert jnp.allclose(out_s, ref_out_s, atol=3e-2, rtol=3e-2)

    # --- selfatt=False branch (XLA path per perf review) ---------------------
    out_g, w_g = luong_gate_attention_forward(h, context, params, selfatt=False)
    jax.block_until_ready((out_g, w_g))
    ref_out_g, ref_w_g = _reference_forward(h, context, params, selfatt=False)
    assert out_g.shape == (B, H) and w_g.shape == (B, L)
    assert jnp.allclose(out_g, ref_out_g, atol=1e-5, rtol=1e-5)
    assert jnp.allclose(w_g, ref_w_g, atol=1e-5, rtol=1e-5)

    print("KERNEL_OK")
</pallas_src>

<mosaic_0001>
module attributes {stable_mosaic.version = 11 : i64} {
  func.func @_self_attn_kernel(%arg0: i32, %arg1: i32, %arg2: i32, %arg3: memref<1x128x128xbf16, #tpu.memory_space<vmem>>, %arg4: memref<1x128x128xbf16, #tpu.memory_space<vmem>>, %arg5: memref<1x128x128xf32, #tpu.memory_space<vmem>>, %arg6: memref<1x128x128xbf16, #tpu.memory_space<vmem>>, %arg7: memref<128x1xf32, #tpu.memory_space<vmem>>, %arg8: memref<128x1xf32, #tpu.memory_space<vmem>>, %arg9: memref<128x128xf32, #tpu.memory_space<vmem>>, %arg10: memref<128x128xf32, #tpu.memory_space<vmem>>) attributes {dimension_semantics = [#tpu.dimension_semantics<parallel>, #tpu.dimension_semantics<parallel>, #tpu.dimension_semantics<arbitrary>], iteration_bounds = array<i64: 2, 1, 1>, scalar_prefetch = 0 : i64, scratch_operands = 4 : i64, tpu.core_type = #tpu.core_type<tc>, window_params = [{transform_indices = @transform_0, window_bounds = array<i64: 1, 128, 128>}, {transform_indices = @transform_1, window_bounds = array<i64: 1, 128, 128>}, {transform_indices = @transform_2, window_bounds = array<i64: 1, 128, 128>}, {transform_indices = @transform_3, window_bounds = array<i64: 1, 128, 128>}]} {
    %c0_i32 = arith.constant 0 : i32
    %0 = arith.cmpi eq, %arg2, %c0_i32 : i32
    %1 = arith.extui %0 : i1 to i32
    %c0_i32_0 = arith.constant 0 : i32
    %2 = arith.cmpi ne, %1, %c0_i32_0 : i32
    scf.if %2 {
      %cst_26 = arith.constant 0xFF800000 : f32
      %37 = vector.broadcast %cst_26 : f32 to vector<128x1xf32>
      %c0_27 = arith.constant 0 : index
      %c0_28 = arith.constant 0 : index
      %38 = vector.load %arg7[%c0_27, %c0_28] : memref<128x1xf32, #tpu.memory_space<vmem>>, vector<128x1xf32>
      tpu.vector_store %arg7[%c0_27, %c0_28], %37 {strides = array<i32>} : memref<128x1xf32, #tpu.memory_space<vmem>>, vector<128x1xf32>,
      %cst_29 = arith.constant 0.000000e+00 : f32
      %39 = vector.broadcast %cst_29 : f32 to vector<128x1xf32>
      %c0_30 = arith.constant 0 : index
      %c0_31 = arith.constant 0 : index
      %40 = vector.load %arg8[%c0_30, %c0_31] : memref<128x1xf32, #tpu.memory_space<vmem>>, vector<128x1xf32>
      tpu.vector_store %arg8[%c0_30, %c0_31], %39 {strides = array<i32>} : memref<128x1xf32, #tpu.memory_space<vmem>>, vector<128x1xf32>,
      %cst_32 = arith.constant 0.000000e+00 : f32
      %41 = vector.broadcast %cst_32 : f32 to vector<128x128xf32>
      %c0_33 = arith.constant 0 : index
      %c0_34 = arith.constant 0 : index
      %42 = vector.load %arg9[%c0_33, %c0_34] : memref<128x128xf32, #tpu.memory_space<vmem>>, vector<128x128xf32>
      tpu.vector_store %arg9[%c0_33, %c0_34], %41 {strides = array<i32>} : memref<128x128xf32, #tpu.memory_space<vmem>>, vector<128x128xf32>,
    } else {
    }
    %c0 = arith.constant 0 : index
    %c0_1 = arith.constant 0 : index
    %c0_2 = arith.constant 0 : index
    %3 = vector.load %arg3[%c0, %c0_1, %c0_2] : memref<1x128x128xbf16, #tpu.memory_space<vmem>>, vector<1x128x128xbf16>
    %4 = vector.shape_cast %3 : vector<1x128x128xbf16> to vector<128x128xbf16>
    %c0_3 = arith.constant 0 : index
    %c0_4 = arith.constant 0 : index
    %c0_5 = arith.constant 0 : index
    %5 = vector.load %arg4[%c0_3, %c0_4, %c0_5] : memref<1x128x128xbf16, #tpu.memory_space<vmem>>, vector<1x128x128xbf16>
    %6 = vector.shape_cast %5 : vector<1x128x128xbf16> to vector<128x128xbf16>
    %cst = arith.constant dense<0.000000e+00> : vector<128x128xf32>
    %7 = tpu.matmul %4, %6, %cst {dimension_numbers = #tpu.dot_dimension_numbers<[1], [1], [0], [0], [0, 0, 1, 0], [], []>} : vector<128x128xbf16>, vector<128x128xbf16>, vector<128x128xf32> -> vector<128x128xf32>
    %cst_6 = arith.constant 0.0441941731 : f32
    %8 = vector.broadcast %cst_6 : f32 to vector<128x128xf32>
    %9 = arith.mulf %7, %8 : vector<128x128xf32>
    %c0_7 = arith.constant 0 : index
    %c0_8 = arith.constant 0 : index
    %10 = vector.load %arg10[%c0_7, %c0_8] : memref<128x128xf32, #tpu.memory_space<vmem>>, vector<128x128xf32>
    tpu.vector_store %arg10[%c0_7, %c0_8], %9 {strides = array<i32>} : memref<128x128xf32, #tpu.memory_space<vmem>>, vector<128x128xf32>,
    %c0_9 = arith.constant 0 : index
    %c0_10 = arith.constant 0 : index
    %11 = vector.load %arg7[%c0_9, %c0_10] : memref<128x1xf32, #tpu.memory_space<vmem>>, vector<128x1xf32>
    %cst_11 = arith.constant dense<0xFF800000> : vector<128xf32>
    %12 = vector.multi_reduction <maximumf>, %9, %cst_11 [1] : vector<128x128xf32> to vector<128xf32>
    %13 = vector.shape_cast %12 : vector<128xf32> to vector<128x1xf32>
    %14 = arith.maximumf %11, %13 : vector<128x1xf32>
    %15 = arith.subf %11, %14 : vector<128x1xf32>
    %16 = math.exp %15 : vector<128x1xf32>
    %17 = vector.broadcast %14 : vector<128x1xf32> to vector<128x128xf32>
    %18 = arith.subf %9, %17 : vector<128x128xf32>
    %19 = math.exp %18 : vector<128x128xf32>
    %c0_12 = arith.constant 0 : index
    %c0_13 = arith.constant 0 : index
    %20 = vector.load %arg8[%c0_12, %c0_13] : memref<128x1xf32, #tpu.memory_space<vmem>>, vector<128x1xf32>
    %21 = arith.mulf %16, %20 : vector<128x1xf32>
    %cst_14 = arith.constant dense<0.000000e+00> : vector<128xf32>
    %22 = vector.multi_reduction <add>, %19, %cst_14 [1] : vector<128x128xf32> to vector<128xf32>
    %23 = vector.shape_cast %22 : vector<128xf32> to vector<128x1xf32>
    %24 = arith.addf %21, %23 : vector<128x1xf32>
    %c0_15 = arith.constant 0 : index
    %c0_16 = arith.constant 0 : index
    %25 = vector.load %arg8[%c0_15, %c0_16] : memref<128x1xf32, #tpu.memory_space<vmem>>, vector<128x1xf32>
    tpu.vector_store %arg8[%c0_15, %c0_16], %24 {strides = array<i32>} : memref<128x1xf32, #tpu.memory_space<vmem>>, vector<128x1xf32>,
    %c0_17 = arith.constant 0 : index
    %c0_18 = arith.constant 0 : index
    %26 = vector.load %arg9[%c0_17, %c0_18] : memref<128x128xf32, #tpu.memory_space<vmem>>, vector<128x128xf32>
    %27 = vector.broadcast %16 : vector<128x1xf32> to vector<128x128xf32>
    %28 = arith.mulf %27, %26 : vector<128x128xf32>
    %29 = arith.truncf %19 : vector<128x128xf32> to vector<128x128xbf16>
    %cst_19 = arith.constant dense<0.000000e+00> : vector<128x128xf32>
    %30 = tpu.matmul %29, %6, %cst_19 {dimension_numbers = #tpu.dot_dimension_numbers<[1], [0], [0], [1], [0, 0, 1, 1], [], []>} : vector<128x128xbf16>, vector<128x128xbf16>, vector<128x128xf32> -> vector<128x128xf32>
    %31 = arith.addf %28, %30 : vector<128x128xf32>
    %c0_20 = arith.constant 0 : index
    %c0_21 = arith.constant 0 : index
    %32 = vector.load %arg9[%c0_20, %c0_21] : memref<128x128xf32, #tpu.memory_space<vmem>>, vector<128x128xf32>
    tpu.vector_store %arg9[%c0_20, %c0_21], %31 {strides = array<i32>} : memref<128x128xf32, #tpu.memory_space<vmem>>, vector<128x128xf32>,
    %c0_22 = arith.constant 0 : index
    %c0_23 = arith.constant 0 : index
    %33 = vector.load %arg7[%c0_22, %c0_23] : memref<128x1xf32, #tpu.memory_space<vmem>>, vector<128x1xf32>
    tpu.vector_store %arg7[%c0_22, %c0_23], %14 {strides = array<i32>} : memref<128x1xf32, #tpu.memory_space<vmem>>, vector<128x1xf32>,
    %c0_i32_24 = arith.constant 0 : i32
    %34 = arith.cmpi eq, %arg2, %c0_i32_24 : i32
    %35 = arith.extui %34 : i1 to i32
    %c0_i32_25 = arith.constant 0 : i32
    %36 = arith.cmpi ne, %35, %c0_i32_25 : i32
    scf.if %36 {
      %c0_26 = arith.constant 0 : index
      %c0_27 = arith.constant 0 : index
      %37 = vector.load %arg8[%c0_26, %c0_27] : memref<128x1xf32, #tpu.memory_space<vmem>>, vector<128x1xf32>
      %38 = tpu.reciprocal %37 {approx = true} : vector<128x1xf32> -> vector<128x1xf32>
      %39 = arith.mulf %37, %38 : vector<128x1xf32>
      %cst_28 = arith.constant 2.000000e+00 : f32
      %40 = vector.broadcast %cst_28 : f32 to vector<128x1xf32>
      %41 = arith.subf %40, %39 : vector<128x1xf32>
      %42 = arith.mulf %38, %41 : vector<128x1xf32>
      %c0_29 = arith.constant 0 : index
      %c0_30 = arith.constant 0 : index
      %43 = vector.load %arg9[%c0_29, %c0_30] : memref<128x128xf32, #tpu.memory_space<vmem>>, vector<128x128xf32>
      %44 = vector.broadcast %42 : vector<128x1xf32> to vector<128x128xf32>
      %45 = arith.mulf %43, %44 : vector<128x128xf32>
      %c0_31 = arith.constant 0 : index
      %c0_32 = arith.constant 0 : index
      %c0_33 = arith.constant 0 : index
      %46 = vector.load %arg5[%c0_31, %c0_32, %c0_33] : memref<1x128x128xf32, #tpu.memory_space<vmem>>, vector<1x128x128xf32>
      %47 = vector.shape_cast %46 : vector<1x128x128xf32> to vector<128x128xf32>
      %48 = vector.shape_cast %45 : vector<128x128xf32> to vector<1x128x128xf32>
      tpu.vector_store %arg5[%c0_31, %c0_32, %c0_33], %48 {strides = array<i32>} : memref<1x128x128xf32, #tpu.memory_space<vmem>>, vector<1x128x128xf32>,
      %c0_34 = arith.constant 0 : index
      %c0_35 = arith.constant 0 : index
      %49 = vector.load %arg10[%c0_34, %c0_35] : memref<128x128xf32, #tpu.memory_space<vmem>>, vector<128x128xf32>
      %c0_36 = arith.constant 0 : index
      %c0_37 = arith.constant 0 : index
      %50 = vector.load %arg7[%c0_36, %c0_37] : memref<128x1xf32, #tpu.memory_space<vmem>>, vector<128x1xf32>
      %51 = vector.broadcast %50 : vector<128x1xf32> to vector<128x128xf32>
      %52 = arith.subf %49, %51 : vector<128x128xf32>
      %53 = math.exp %52 : vector<128x128xf32>
      %54 = vector.broadcast %42 : vector<128x1xf32> to vector<128x128xf32>
      %55 = arith.mulf %53, %54 : vector<128x128xf32>
      %56 = arith.truncf %55 : vector<128x128xf32> to vector<128x128xbf16>
      %c0_38 = arith.constant 0 : index
      %c0_39 = arith.constant 0 : index
      %c0_40 = arith.constant 0 : index
      %57 = vector.load %arg6[%c0_38, %c0_39, %c0_40] : memref<1x128x128xbf16, #tpu.memory_space<vmem>>, vector<1x128x128xbf16>
      %58 = vector.shape_cast %57 : vector<1x128x128xbf16> to vector<128x128xbf16>
      %59 = vector.shape_cast %56 : vector<128x128xbf16> to vector<1x128x128xbf16>
      tpu.vector_store %arg6[%c0_38, %c0_39, %c0_40], %59 {strides = array<i32>} : memref<1x128x128xbf16, #tpu.memory_space<vmem>>, vector<1x128x128xbf16>,
    } else {
    }
    return
  }
  func.func @transform_0(%arg0: i32, %arg1: i32, %arg2: i32) -> (i32, i32, i32) {
    %c0_i32 = arith.constant 0 : i32
    %c0_i32_0 = arith.constant 0 : i32
    return %arg0, %arg1, %c0_i32 : i32, i32, i32
  }
  func.func @transform_1(%arg0: i32, %arg1: i32, %arg2: i32) -> (i32, i32, i32) {
    %c0_i32 = arith.constant 0 : i32
    %c0_i32_0 = arith.constant 0 : i32
    return %arg0, %arg2, %c0_i32 : i32, i32, i32
  }
  func.func @transform_2(%arg0: i32, %arg1: i32, %arg2: i32) -> (i32, i32, i32) {
    %c0_i32 = arith.constant 0 : i32
    %c0_i32_0 = arith.constant 0 : i32
    return %arg0, %arg1, %c0_i32 : i32, i32, i32
  }
  func.func @transform_3(%arg0: i32, %arg1: i32, %arg2: i32) -> (i32, i32, i32) {
    %c0_i32 = arith.constant 0 : i32
    %c0_i32_0 = arith.constant 0 : i32
    return %arg0, %arg1, %c0_i32 : i32, i32, i32
  }
}

</mosaic_0001>

<llo_original>
// kernel: tpu_custom_call.1
$region0: #{tpu_custom_call.1}
  #allocation0 [shape = 'u32[]', space=smem, size = 0x4, offset = 0x4, fixed_abs, tag = 'smem constant byte address 0x4 - core index']
  #allocation1 [shape = 'u32[144,128]{1,0:T(1,128)}', space=vmem, size = 0x12000, scoped, tag = 'internal scratch']
  #allocation2 [shape = 'f32[128,1]{1,0:T(8,128)}', space=vmem, size = 0x10000, scoped, tag = 'scratch operand']
  #allocation3 [shape = 'f32[128,1]{1,0:T(8,128)}', space=vmem, size = 0x10000, scoped, tag = 'scratch operand']
  #allocation4 [shape = 'f32[128,128]{1,0:T(8,128)}', space=vmem, size = 0x10000, scoped, tag = 'scratch operand']
  #allocation5 [shape = 'f32[128,128]{1,0:T(8,128)}', space=vmem, size = 0x10000, scoped, tag = 'scratch operand']
  %s0 = inlined_call_operand.hbm [shape: bf16[2,128,128], index: 0, kind: input, shape index: {}]
  %s1 = inlined_call_operand.hbm [shape: bf16[2,128,128], index: 1, kind: input, shape index: {}]
  %s2 = inlined_call_operand.hbm [shape: f32[2,128,128], index: 2, kind: output, shape index: {0}]
  %s3 = inlined_call_operand.hbm [shape: bf16[2,128,128], index: 3, kind: output, shape index: {1}]
  %4 = xla_tuple %s2, %s3
  %s5 = sld [smem:[#allocation0]]
  $region65: #{tpu_custom_call.1} parent=0
    _
  %s7 = ssub.s32 1, %s5
  %s8 = scalar_select 0, %s7, %s5
  $region1: #{tpu_custom_call.1} parent=0
    #allocation6 [shape = 'u8[65536]{0}', space=vmem, size = 0x10000, scoped, tag = 'input window, operand 0']
    #allocation7 [shape = 's32[2]{0}', space=sflag, size = 0x8, scoped, tag = 'scoped memory for tpu_custom_call.1']
    #allocation8 [shape = 's32[2]{0}', space=sflag, size = 0x8, scoped, tag = 'scoped memory for tpu_custom_call.1']
    #allocation9 [shape = 'u8[65536]{0}', space=vmem, size = 0x10000, scoped, tag = 'input window, operand 1']
    #allocation10 [shape = 's32[2]{0}', space=sflag, size = 0x8, scoped, tag = 'scoped memory for tpu_custom_call.1']
    #allocation11 [shape = 'u8[131072]{0}', space=vmem, size = 0x20000, scoped, tag = 'output window, operand 0']
    #allocation12 [shape = 'u8[65536]{0}', space=vmem, size = 0x10000, scoped, tag = 'output window, operand 1']
    #allocation13 [shape = 's32[2]{0}', space=sflag, size = 0x8, scoped, tag = 'scoped memory for tpu_custom_call.1']
    %9 = vsyncpa [#allocation7], 0
    %s10 = scalar_lea.sflag [#allocation7], 1
    %11 = vsyncpa %s10, 0
    %12 = vsyncpa [#allocation10], 0
    %s13 = scalar_lea.sflag [#allocation10], 1
    %14 = vsyncpa %s13, 0
    %15 = vsyncpa [#allocation8], 0
    %s16 = scalar_lea.sflag [#allocation8], 1
    %17 = vsyncpa %s16, 0
    %18 = vsyncpa [#allocation13], 0
    %s19 = scalar_lea.sflag [#allocation13], 1
    %20 = vsyncpa %s19, 0
    loop: start=0, step=1, limit=4
    $region2: #{tpu_custom_call.1} parent=1 // loop_pre_header
      _
    $region3: #{tpu_custom_call.1} parent=1 // loop_header
      %s22 = sphi 0, %s26
      %p23 = scmp.ge.s32.totalorder %s22, 4
      %s29 = sphi 0, %s48
      %s30 = sphi 0, %s44
      %s31 = sphi 0, %s40
      %s32 = sphi 0, %s29
      %s33 = sphi 0, %s30
      %s34 = sphi 0, %s31
      %s35 = sphi 0, %s32
      %s36 = sphi 0, %s33
      %s37 = sphi 0, %s34
      %s53 = sphi 0, %s55
      %s56 = sphi 0, %s53
      %s57 = sphi 0, %s56
      %s73 = sphi 0, %s57
      %s81 = sphi 0, %s83
      %s84 = sphi 0, %s81
      %s85 = sphi 0, %s84
      %s101 = sphi 0, %s85
      %s109 = sphi 0, %s111
      %s112 = sphi 0, %s109
      %s113 = sphi 0, %s112
      %s129 = sphi 0, %s113
      %s137 = sphi 0, %s139
      %s140 = sphi 0, %s137
      %s141 = sphi 0, %s140
      %s157 = sphi 0, %s141
    $region4: #{tpu_custom_call.1} parent=1 // loop_header_branch
      %25 = sbr.rel (%p23) target = $region8
    $region5: #{tpu_custom_call.1} parent=1 // loop_body
      %s27 = ssub.s32 %s22, 1
      %s28 = ssub.s32 %s22, 2
      %s38 = sadd.s32 1, %s31
      %p39 = scmp.ge.s32.totalorder %s38, 1
      %s40 = scalar_select %p39, 0, %s38
      %s41 = sadd.s32 1, %s30
      %s42 = scalar_select %p39, %s41, %s30
      %p43 = scmp.ge.s32.totalorder %s42, 1
      %s44 = scalar_select %p43, 0, %s42
      %s45 = sadd.s32 1, %s29
      %s46 = scalar_select %p43, %s45, %s29
      %p47 = scmp.ge.s32.totalorder %s46, 2
      %s48 = scalar_select %p47, 0, %s46
      %s49 = ssub.s32 %s29, %s48
      %s50 = ssub.s32 %s30, %s44
      %s51 = sor.u32 %s49, %s50
      %p52 = scmp.eq.s32.totalorder %s51, 0
      %s54 = sadd.s32 %s53, 1
      %s55 = scalar_select %p52, %s53, %s54
      %p58 = pneg %p52
      %p59 = scmp.eq.s32.totalorder %s22, 1
      %p60 = por %p58, %p59
      %p61 = scmp.ne.s32.totalorder %s53, %s56
      %p62 = scmp.eq.s32.totalorder %s22, 0
      %p63 = por %p61, %p62
      %p64 = scmp.ne.s32.totalorder %s53, %s56
      %p65 = scmp.eq.s32.totalorder %s27, 1
      %p66 = por %p64, %p65
      %p67 = scmp.ne.s32.totalorder %s56, %s57
      %p68 = scmp.eq.s32.totalorder %s27, 0
      %p69 = por %p67, %p68
      %p70 = scmp.ne.s32.totalorder %s56, %s57
      %p71 = scmp.eq.s32.totalorder %s28, 1
      %p72 = por %p70, %p71
      %p74 = scmp.ne.s32.totalorder %s57, %s73
      %p75 = scmp.eq.s32.totalorder %s28, 0
      %p76 = por %p74, %p75
      %s77 = ssub.s32 %s29, %s48
      %s78 = ssub.s32 %s31, %s40
      %s79 = sor.u32 %s77, %s78
      %p80 = scmp.eq.s32.totalorder %s79, 0
      %s82 = sadd.s32 %s81, 1
      %s83 = scalar_select %p80, %s81, %s82
      %p86 = pneg %p80
      %p87 = scmp.eq.s32.totalorder %s22, 1
      %p88 = por %p86, %p87
      %p89 = scmp.ne.s32.totalorder %s81, %s84
      %p90 = scmp.eq.s32.totalorder %s22, 0
      %p91 = por %p89, %p90
      %p92 = scmp.ne.s32.totalorder %s81, %s84
      %p93 = scmp.eq.s32.totalorder %s27, 1
      %p94 = por %p92, %p93
      %p95 = scmp.ne.s32.totalorder %s84, %s85
      %p96 = scmp.eq.s32.totalorder %s27, 0
      %p97 = por %p95, %p96
      %p98 = scmp.ne.s32.totalorder %s84, %s85
      %p99 = scmp.eq.s32.totalorder %s28, 1
      %p100 = por %p98, %p99
      %p102 = scmp.ne.s32.totalorder %s85, %s101
      %p103 = scmp.eq.s32.totalorder %s28, 0
      %p104 = por %p102, %p103
      %s105 = ssub.s32 %s29, %s48
      %s106 = ssub.s32 %s30, %s44
      %s107 = sor.u32 %s105, %s106
      %p108 = scmp.eq.s32.totalorder %s107, 0
      %s110 = sadd.s32 %s109, 1
      %s111 = scalar_select %p108, %s109, %s110
      %p114 = pneg %p108
      %p115 = scmp.eq.s32.totalorder %s22, 1
      %p116 = por %p114, %p115
      %p117 = scmp.ne.s32.totalorder %s109, %s112
      %p118 = scmp.eq.s32.totalorder %s22, 0
      %p119 = por %p117, %p118
      %p120 = scmp.ne.s32.totalorder %s109, %s112
      %p121 = scmp.eq.s32.totalorder %s27, 1
      %p122 = por %p120, %p121
      %p123 = scmp.ne.s32.totalorder %s112, %s113
      %p124 = scmp.eq.s32.totalorder %s27, 0
      %p125 = por %p123, %p124
      %p126 = scmp.ne.s32.totalorder %s112, %s113
      %p127 = scmp.eq.s32.totalorder %s28, 1
      %p128 = por %p126, %p127
      %p130 = scmp.ne.s32.totalorder %s113, %s129
      %p131 = scmp.eq.s32.totalorder %s28, 0
      %p132 = por %p130, %p131
      %s133 = ssub.s32 %s29, %s48
      %s134 = ssub.s32 %s30, %s44
      %s135 = sor.u32 %s133, %s134
      %p136 = scmp.eq.s32.totalorder %s135, 0
      %s138 = sadd.s32 %s137, 1
      %s139 = scalar_select %p136, %s137, %s138
      %p142 = pneg %p136
      %p143 = scmp.eq.s32.totalorder %s22, 1
      %p144 = por %p142, %p143
      %p145 = scmp.ne.s32.totalorder %s137, %s140
      %p146 = scmp.eq.s32.totalorder %s22, 0
      %p147 = por %p145, %p146
      %p148 = scmp.ne.s32.totalorder %s137, %s140
      %p149 = scmp.eq.s32.totalorder %s27, 1
      %p150 = por %p148, %p149
      %p151 = scmp.ne.s32.totalorder %s140, %s141
      %p152 = scmp.eq.s32.totalorder %s27, 0
      %p153 = por %p151, %p152
      %p154 = scmp.ne.s32.totalorder %s140, %s141
      %p155 = scmp.eq.s32.totalorder %s28, 1
      %p156 = por %p154, %p155
      %p158 = scmp.ne.s32.totalorder %s141, %s157
      %p159 = scmp.eq.s32.totalorder %s28, 0
      %p160 = por %p158, %p159
      %p161 = scmp.le.s32.totalorder 1, %s22
      %p162 = scmp.lt.s32.totalorder %s22, 3
      %p163 = pnand %p161, %p162
      %p164 = pneg %p163
      // Predicated region
      $region9: #{tpu_custom_call.1} parent=5 // pred_check
        _
      $region10: #{tpu_custom_call.1} parent=5 // pred_check_branch
        %166 = sbr.rel (%p163) target = $region12
      $region11: #{tpu_custom_call.1} parent=5 // pred_region
        %s167 = ssub.s32 %s22, 1
      $region12: #{tpu_custom_call.1} parent=5 // pred_fallthru
        _
      %p168 = scmp.lt.s32.totalorder %s22, 2
      // Predicated region
      $region13: #{tpu_custom_call.1} parent=5 // pred_check
        %p169 = pneg %p168
      $region14: #{tpu_custom_call.1} parent=5 // pred_check_branch
        %171 = sbr.rel (%p169) target = $region16
      $region15: #{tpu_custom_call.1} parent=5 // pred_region
        // Predicated region
        $region17: #{tpu_custom_call.1} parent=15 // pred_check
          %p172 = pneg %p63
        $region18: #{tpu_custom_call.1} parent=15 // pred_check_branch
          %174 = sbr.rel (%p172) target = $region20
        $region19: #{tpu_custom_call.1} parent=15 // pred_region
          %s175 = sand.u32 %s53, 1
          %s176 = scalar_lea.sflag [#allocation7], %s175
          %s177 = sand.u32 %s53, 1
          %s178 = smul.addr %s177, 64
          %s179 = scalar_lea.vmem [#allocation6], %s178
          %s180 = smul.u32 16, %s30
          %s182 = ssub.s32 1024, 1024
          %183 = vsyncadd %s176, %s182
          %s184 = smul.addr %s29, 16
          %s185 = sadd.s32 %s180, %s184
          %s186 = smul.addr %s185, 64
          %s187 = scalar_lea.hbm %s0, %s186
          %s188 = sshll.u32 %s179, 4
          %s189 = int_to_ptr.vmem [resolvable:$true] %s188
          %194 = dma.hbm_to_vmem [thread:$0]  %s187, 1024, %s189, %s176, 64, 64, 4
        $region20: #{tpu_custom_call.1} parent=15 // pred_fallthru
          _
        // Predicated region
        $region21: #{tpu_custom_call.1} parent=15 // pred_check
          %p195 = pneg %p91
        $region22: #{tpu_custom_call.1} parent=15 // pred_check_branch
          %197 = sbr.rel (%p195) target = $region24
        $region23: #{tpu_custom_call.1} parent=15 // pred_region
          %s198 = sand.u32 %s81, 1
          %s199 = scalar_lea.sflag [#allocation10], %s198
          %s200 = sand.u32 %s81, 1
          %s201 = smul.addr %s200, 64
          %s202 = scalar_lea.vmem [#allocation9], %s201
          %s203 = smul.u32 16, %s31
          %s205 = ssub.s32 1024, 1024
          %206 = vsyncadd %s199, %s205
          %s207 = smul.addr %s29, 16
          %s208 = sadd.s32 %s203, %s207
          %s209 = smul.addr %s208, 64
          %s210 = scalar_lea.hbm %s1, %s209
          %s211 = sshll.u32 %s202, 4
          %s212 = int_to_ptr.vmem [resolvable:$true] %s211
          %217 = dma.hbm_to_vmem [thread:$0]  %s210, 1024, %s212, %s199, 64, 64, 4
        $region24: #{tpu_custom_call.1} parent=15 // pred_fallthru
          _
      $region16: #{tpu_custom_call.1} parent=5 // pred_fallthru
        _
      %p218 = scmp.le.s32.totalorder 1, %s22
      %p219 = scmp.lt.s32.totalorder %s22, 3
      %p220 = pnand %p218, %p219
      %p221 = pneg %p220
      // Predicated region
      $region25: #{tpu_custom_call.1} parent=5 // pred_check
        _
      $region26: #{tpu_custom_call.1} parent=5 // pred_check_branch
        %223 = sbr.rel (%p220) target = $region28
      $region27: #{tpu_custom_call.1} parent=5 // pred_region
        %s224 = ssub.s32 %s22, 1
        %s225 = sand.u32 %s56, 1
        %s226 = scalar_lea.sflag [#allocation7], %s225
        %s227 = sand.u32 %s56, 1
        %s228 = smul.addr %s227, 64
        %s229 = scalar_lea.vmem [#allocation6], %s228
        // Predicated region
        $region29: #{tpu_custom_call.1} parent=27 // pred_check
          %p230 = pneg %p69
        $region30: #{tpu_custom_call.1} parent=27 // pred_check_branch
          %232 = sbr.rel (%p230) target = $region32
        $region31: #{tpu_custom_call.1} parent=27 // pred_region
          %233 = dma.done %s226, 1024
        $region32: #{tpu_custom_call.1} parent=27 // pred_fallthru
          _
        %s234 = sand.u32 %s84, 1
        %s235 = scalar_lea.sflag [#allocation10], %s234
        %s236 = sand.u32 %s84, 1
        %s237 = smul.addr %s236, 64
        %s238 = scalar_lea.vmem [#allocation9], %s237
        // Predicated region
        $region33: #{tpu_custom_call.1} parent=27 // pred_check
          %p239 = pneg %p97
        $region34: #{tpu_custom_call.1} parent=27 // pred_check_branch
          %241 = sbr.rel (%p239) target = $region36
        $region35: #{tpu_custom_call.1} parent=27 // pred_region
          %242 = dma.done %s235, 1024
        $region36: #{tpu_custom_call.1} parent=27 // pred_fallthru
          _
        %s243 = sand.u32 %s56, 1
        %s244 = scalar_lea.sflag [#allocation7], %s243
        %s245 = sand.u32 %s56, 1
        %s246 = smul.addr %s245, 64
        %s247 = scalar_lea.vmem [#allocation6], %s246
        %p248 = pneg %p69
        %p249 = pneg %p66
        %s250 = sand.u32 %s84, 1
        %s251 = scalar_lea.sflag [#allocation10], %s250
        %s252 = sand.u32 %s84, 1
        %s253 = smul.addr %s252, 64
        %s254 = scalar_lea.vmem [#allocation9], %s253
        %p255 = pneg %p97
        %p256 = pneg %p94
        %p257 = pneg %p125
        %p258 = pneg %p122
        %s259 = sand.u32 %s112, 1
        %s260 = scalar_lea.sflag [#allocation8], %s259
        %s261 = sand.u32 %s112, 1
        %s262 = smul.addr %s261, 128
        %s263 = scalar_lea.vmem [#allocation11], %s262
        %p264 = pneg %p153
        %p265 = pneg %p150
        %s266 = sand.u32 %s140, 1
        %s267 = scalar_lea.sflag [#allocation13], %s266
        %s268 = sand.u32 %s140, 1
        %s269 = smul.addr %s268, 64
        %s270 = scalar_lea.vmem [#allocation12], %s269
        %s271 = smul.u32 16, %s33
        %s272 = smul.u32 16, %s34
        %s273 = smul.u32 16, %s33
        %s274 = smul.u32 16, %s33
        %p276 = scmp.eq.s32.totalorder %s34, 0
        // Predicated region
        $region37: #{tpu_custom_call.1} parent=27 // pred_check
          %p277 = pneg %p276
        $region38: #{tpu_custom_call.1} parent=27 // pred_check_branch
          %279 = sbr.rel (%p277) target = $region40
        $region39: #{tpu_custom_call.1} parent=27 // pred_region
          %vm280 = vcmask 7168
          %281 = vst.msk [vmem:[#allocation2] sm:$0xff] %vm280, -inf
          %282 = vst.msk [vmem:[#allocation2 + $0x8] sm:$0xff] %vm280, -inf
          %283 = vst.msk [vmem:[#allocation2 + $0x10] sm:$0xff] %vm280, -inf
          %284 = vst.msk [vmem:[#allocation2 + $0x18] sm:$0xff] %vm280, -inf
          %285 = vst.msk [vmem:[#allocation2 + $0x20] sm:$0xff] %vm280, -inf
          %286 = vst.msk [vmem:[#allocation2 + $0x28] sm:$0xff] %vm280, -inf
          %287 = vst.msk [vmem:[#allocation2 + $0x30] sm:$0xff] %vm280, -inf
          %288 = vst.msk [vmem:[#allocation2 + $0x38] sm:$0xff] %vm280, -inf
          %289 = vst.msk [vmem:[#allocation2 + $0x40] sm:$0xff] %vm280, -inf
          %290 = vst.msk [vmem:[#allocation2 + $0x48] sm:$0xff] %vm280, -inf
          %291 = vst.msk [vmem:[#allocation2 + $0x50] sm:$0xff] %vm280, -inf
          %292 = vst.msk [vmem:[#allocation2 + $0x58] sm:$0xff] %vm280, -inf
          %293 = vst.msk [vmem:[#allocation2 + $0x60] sm:$0xff] %vm280, -inf
          %294 = vst.msk [vmem:[#allocation2 + $0x68] sm:$0xff] %vm280, -inf
          %295 = vst.msk [vmem:[#allocation2 + $0x70] sm:$0xff] %vm280, -inf
          %296 = vst.msk [vmem:[#allocation2 + $0x78] sm:$0xff] %vm280, -inf
          %297 = vst.msk [vmem:[#allocation3] sm:$0xff] %vm280, 0.0
          %298 = vst.msk [vmem:[#allocation3 + $0x8] sm:$0xff] %vm280, 0.0
          %299 = vst.msk [vmem:[#allocation3 + $0x10] sm:$0xff] %vm280, 0.0
          %300 = vst.msk [vmem:[#allocation3 + $0x18] sm:$0xff] %vm280, 0.0
          %301 = vst.msk [vmem:[#allocation3 + $0x20] sm:$0xff] %vm280, 0.0
          %302 = vst.msk [vmem:[#allocation3 + $0x28] sm:$0xff] %vm280, 0.0
          %303 = vst.msk [vmem:[#allocation3 + $0x30] sm:$0xff] %vm280, 0.0
          %304 = vst.msk [vmem:[#allocation3 + $0x38] sm:$0xff] %vm280, 0.0
          %305 = vst.msk [vmem:[#allocation3 + $0x40] sm:$0xff] %vm280, 0.0
          %306 = vst.msk [vmem:[#allocation3 + $0x48] sm:$0xff] %vm280, 0.0
          %307 = vst.msk [vmem:[#allocation3 + $0x50] sm:$0xff] %vm280, 0.0
          %308 = vst.msk [vmem:[#allocation3 + $0x58] sm:$0xff] %vm280, 0.0
          %309 = vst.msk [vmem:[#allocation3 + $0x60] sm:$0xff] %vm280, 0.0
          %310 = vst.msk [vmem:[#allocation3 + $0x68] sm:$0xff] %vm280, 0.0
          %311 = vst.msk [vmem:[#allocation3 + $0x70] sm:$0xff] %vm280, 0.0
          %312 = vst.msk [vmem:[#allocation3 + $0x78] sm:$0xff] %vm280, 0.0
          %313 = vst [vmem:[#allocation4] sm:$0xff] 0.0
          %314 = vst [vmem:[#allocation4 + $0x8] sm:$0xff] 0.0
          %315 = vst [vmem:[#allocation4 + $0x10] sm:$0xff] 0.0
          %316 = vst [vmem:[#allocation4 + $0x18] sm:$0xff] 0.0
          %317 = vst [vmem:[#allocation4 + $0x20] sm:$0xff] 0.0
          %318 = vst [vmem:[#allocation4 + $0x28] sm:$0xff] 0.0
          %319 = vst [vmem:[#allocation4 + $0x30] sm:$0xff] 0.0
          %320 = vst [vmem:[#allocation4 + $0x38] sm:$0xff] 0.0
          %321 = vst [vmem:[#allocation4 + $0x40] sm:$0xff] 0.0
          %322 = vst [vmem:[#allocation4 + $0x48] sm:$0xff] 0.0
          %323 = vst [vmem:[#allocation4 + $0x50] sm:$0xff] 0.0
          %324 = vst [vmem:[#allocation4 + $0x58] sm:$0xff] 0.0
          %325 = vst [vmem:[#allocation4 + $0x60] sm:$0xff] 0.0
          %326 = vst [vmem:[#allocation4 + $0x68] sm:$0xff] 0.0
          %327 = vst [vmem:[#allocation4 + $0x70] sm:$0xff] 0.0
          %328 = vst [vmem:[#allocation4 + $0x78] sm:$0xff] 0.0
        $region40: #{tpu_custom_call.1} parent=27 // pred_fallthru
          _
        %v329 = vld [vmem:[%s229] sm:$0xf]
        %v330 = vld [vmem:[%s229 + $0x4] sm:$0xf]
        %v331 = vld [vmem:[%s229 + $0x8] sm:$0xf]
        %v332 = vld [vmem:[%s229 + $0xc] sm:$0xf]
        %v333 = vld [vmem:[%s229 + $0x10] sm:$0xf]
        %v334 = vld [vmem:[%s229 + $0x14] sm:$0xf]
        %v335 = vld [vmem:[%s229 + $0x18] sm:$0xf]
        %v336 = vld [vmem:[%s229 + $0x1c] sm:$0xf]
        %v337 = vld [vmem:[%s229 + $0x20] sm:$0xf]
        %v338 = vld [vmem:[%s229 + $0x24] sm:$0xf]
        %v339 = vld [vmem:[%s229 + $0x28] sm:$0xf]
        %v340 = vld [vmem:[%s229 + $0x2c] sm:$0xf]
        %v341 = vld [vmem:[%s229 + $0x30] sm:$0xf]
        %v342 = vld [vmem:[%s229 + $0x34] sm:$0xf]
        %v343 = vld [vmem:[%s229 + $0x38] sm:$0xf]
        %v344 = vld [vmem:[%s229 + $0x3c] sm:$0xf]
        %v345 = vld [vmem:[%s238] sm:$0xf]
        %v346 = vld [vmem:[%s238 + $0x4] sm:$0xf]
        %v347 = vld [vmem:[%s238 + $0x8] sm:$0xf]
        %v348 = vld [vmem:[%s238 + $0xc] sm:$0xf]
        %v349 = vld [vmem:[%s238 + $0x10] sm:$0xf]
        %v350 = vld [vmem:[%s238 + $0x14] sm:$0xf]
        %v351 = vld [vmem:[%s238 + $0x18] sm:$0xf]
        %v352 = vld [vmem:[%s238 + $0x1c] sm:$0xf]
        %v353 = vld [vmem:[%s238 + $0x20] sm:$0xf]
        %v354 = vld [vmem:[%s238 + $0x24] sm:$0xf]
        %v355 = vld [vmem:[%s238 + $0x28] sm:$0xf]
        %v356 = vld [vmem:[%s238 + $0x2c] sm:$0xf]
        %v357 = vld [vmem:[%s238 + $0x30] sm:$0xf]
        %v358 = vld [vmem:[%s238 + $0x34] sm:$0xf]
        %v359 = vld [vmem:[%s238 + $0x38] sm:$0xf]
        %v360 = vld [vmem:[%s238 + $0x3c] sm:$0xf]
        %v377 = vunpack.c.l.b16 %v329
        %v378 = vunpack.c.l.b16 %v330
        %v379 = vunpack.c.l.b16 %v331
        %v380 = vunpack.c.l.b16 %v332
        %v381 = vunpack.c.l.b16 %v333
        %v382 = vunpack.c.l.b16 %v334
        %v383 = vunpack.c.l.b16 %v335
        %v384 = vunpack.c.l.b16 %v336
        %v385 = vunpack.c.l.b16 %v337
        %v386 = vunpack.c.l.b16 %v338
        %v387 = vunpack.c.l.b16 %v339
        %v388 = vunpack.c.l.b16 %v340
        %v389 = vunpack.c.l.b16 %v341
        %v390 = vunpack.c.l.b16 %v342
        %v391 = vunpack.c.l.b16 %v343
        %v392 = vunpack.c.l.b16 %v344
        %v393 = vpack.c.b16 %v378, %v377
        %v394 = vpack.c.b16 %v380, %v379
        %v395 = vpack.c.b16 %v382, %v381
        %v396 = vpack.c.b16 %v384, %v383
        %v397 = vpack.c.b16 %v386, %v385
        %v398 = vpack.c.b16 %v388, %v387
        %v399 = vpack.c.b16 %v390, %v389
        %v400 = vpack.c.b16 %v392, %v391
        %v425 = vunpack.c.l.b16 %v345
        %v426 = vunpack.c.l.b16 %v346
        %v427 = vunpack.c.l.b16 %v347
        %v428 = vunpack.c.l.b16 %v348
        %v429 = vunpack.c.l.b16 %v349
        %v430 = vunpack.c.l.b16 %v350
        %v431 = vunpack.c.l.b16 %v351
        %v432 = vunpack.c.l.b16 %v352
        %v433 = vunpack.c.l.b16 %v353
        %v434 = vunpack.c.l.b16 %v354
        %v435 = vunpack.c.l.b16 %v355
        %v436 = vunpack.c.l.b16 %v356
        %v437 = vunpack.c.l.b16 %v357
        %v438 = vunpack.c.l.b16 %v358
        %v439 = vunpack.c.l.b16 %v359
        %v440 = vunpack.c.l.b16 %v360
        %v441 = vpack.c.b16 %v426, %v425
        %v442 = vpack.c.b16 %v428, %v427
        %v443 = vpack.c.b16 %v430, %v429
        %v444 = vpack.c.b16 %v432, %v431
        %v445 = vpack.c.b16 %v434, %v433
        %v446 = vpack.c.b16 %v436, %v435
        %v447 = vpack.c.b16 %v438, %v437
        %v448 = vpack.c.b16 %v440, %v439
        %457 = vmatprep.subr.bf16.mxu0 0
        %458 = vmatpush1.bf16.xpose.msra.mxu0 %v441
        %459 = vmatprep.subr.bf16.mxu0 0
        %460 = vmatpush1.bf16.xpose.msra.mxu0 %v442
        %461 = vmatprep.subr.bf16.mxu0 0
        %462 = vmatpush1.bf16.xpose.msra.mxu0 %v443
        %463 = vmatprep.subr.bf16.mxu0 0
        %464 = vmatpush1.bf16.xpose.msra.mxu0 %v444
        %465 = vmatprep.subr.bf16.mxu0 0
        %466 = vmatpush1.bf16.xpose.msra.mxu0 %v445
        %467 = vmatprep.subr.bf16.mxu0 0
        %468 = vmatpush1.bf16.xpose.msra.mxu0 %v446
        %469 = vmatprep.subr.bf16.mxu0 0
        %470 = vmatpush1.bf16.xpose.msra.mxu0 %v447
        %471 = vmatprep.subr.bf16.mxu0 0
        %472 = vmatpush1.bf16.xpose.msra.mxu0 %v448
        %473 = vmatprep.subr.bf16.mxu0 0
        %474 = vmatpush1.bf16.xpose.msra.mxu0 0
        %475 = vmatprep.subr.bf16.mxu0 0
        %476 = vmatpush1.bf16.xpose.msra.mxu0 0
        %477 = vmatprep.subr.bf16.mxu0 0
        %478 = vmatpush1.bf16.xpose.msra.mxu0 0
        %479 = vmatprep.subr.bf16.mxu0 0
        %480 = vmatpush1.bf16.xpose.msra.mxu0 0
        %481 = vmatprep.subr.bf16.mxu0 0
        %482 = vmatpush1.bf16.xpose.msra.mxu0 0
        %483 = vmatprep.subr.bf16.mxu0 0
        %484 = vmatpush1.bf16.xpose.msra.mxu0 0
        %485 = vmatprep.subr.bf16.mxu0 0
        %486 = vmatpush1.bf16.xpose.msra.mxu0 0
        %487 = vmatprep.subr.bf16.mxu0 0
        %488 = vmatpush1.bf16.xpose.msra.mxu0 0
        %489 = vmatprep.mubr.bf16.mxu0 0
        %490 = vmatmul.mubr.bf16.gmra.mrb[0].mxu0 %v393
        %v491 = vpop.f32.mrb[0].mxu0
        %v492 = vadd.f32 0.0, %v491
        %v493 = vpop.f32.mrb[0].mxu0
        %v494 = vpop.f32.mrb[0].mxu0
        %v495 = vadd.f32 0.0, %v494
        %v496 = vpop.f32.mrb[0].mxu0
        %497 = vmatprep.mubr.bf16.mxu0 0
        %498 = vmatmul.mubr.bf16.gmra.mrb[0].mxu0 %v394
        %v499 = vpop.f32.mrb[0].mxu0
        %v500 = vadd.f32 0.0, %v499
        %v501 = vpop.f32.mrb[0].mxu0
        %v502 = vpop.f32.mrb[0].mxu0
        %v503 = vadd.f32 0.0, %v502
        %v504 = vpop.f32.mrb[0].mxu0
        %505 = vmatprep.mubr.bf16.mxu0 0
        %506 = vmatmul.mubr.bf16.gmra.mrb[0].mxu0 %v395
        %v507 = vpop.f32.mrb[0].mxu0
        %v508 = vadd.f32 0.0, %v507
        %v509 = vpop.f32.mrb[0].mxu0
        %v510 = vpop.f32.mrb[0].mxu0
        %v511 = vadd.f32 0.0, %v510
        %v512 = vpop.f32.mrb[0].mxu0
        %513 = vmatprep.mubr.bf16.mxu0 0
        %514 = vmatmul.mubr.bf16.gmra.mrb[0].mxu0 %v396
        %v515 = vpop.f32.mrb[0].mxu0
        %v516 = vadd.f32 0.0, %v515
        %v517 = vpop.f32.mrb[0].mxu0
        %v518 = vpop.f32.mrb[0].mxu0
        %v519 = vadd.f32 0.0, %v518
        %v520 = vpop.f32.mrb[0].mxu0
        %521 = vmatprep.mubr.bf16.mxu0 0
        %522 = vmatmul.mubr.bf16.gmra.mrb[0].mxu0 %v397
        %v523 = vpop.f32.mrb[0].mxu0
        %v524 = vadd.f32 0.0, %v523
        %v525 = vpop.f32.mrb[0].mxu0
        %v526 = vpop.f32.mrb[0].mxu0
        %v527 = vadd.f32 0.0, %v526
        %v528 = vpop.f32.mrb[0].mxu0
        %529 = vmatprep.mubr.bf16.mxu0 0
        %530 = vmatmul.mubr.bf16.gmra.mrb[0].mxu0 %v398
        %v531 = vpop.f32.mrb[0].mxu0
        %v532 = vadd.f32 0.0, %v531
        %v533 = vpop.f32.mrb[0].mxu0
        %v534 = vpop.f32.mrb[0].mxu0
        %v535 = vadd.f32 0.0, %v534
        %v536 = vpop.f32.mrb[0].mxu0
        %537 = vmatprep.mubr.bf16.mxu0 0
        %538 = vmatmul.mubr.bf16.gmra.mrb[0].mxu0 %v399
        %v539 = vpop.f32.mrb[0].mxu0
        %v540 = vadd.f32 0.0, %v539
        %v541 = vpop.f32.mrb[0].mxu0
        %v542 = vpop.f32.mrb[0].mxu0
        %v543 = vadd.f32 0.0, %v542
        %v544 = vpop.f32.mrb[0].mxu0
        %545 = vmatprep.mubr.bf16.mxu0 0
        %546 = vmatmul.mubr.bf16.gmra.mrb[0].mxu0 %v400
        %v547 = vpop.f32.mrb[0].mxu0
        %v548 = vadd.f32 0.0, %v547
        %v549 = vpop.f32.mrb[0].mxu0
        %v550 = vpop.f32.mrb[0].mxu0
        %v551 = vadd.f32 0.0, %v550
        %v552 = vpop.f32.mrb[0].mxu0
        %553 = vdwg.mxu0
        %v554 = vmul.f32 %v492, 0.044194173
        %v555 = vmul.f32 %v495, 0.044194173
        %v556 = vmul.f32 %v500, 0.044194173
        %v557 = vmul.f32 %v503, 0.044194173
        %v558 = vmul.f32 %v508, 0.044194173
        %v559 = vmul.f32 %v511, 0.044194173
        %v560 = vmul.f32 %v516, 0.044194173
        %v561 = vmul.f32 %v519, 0.044194173
        %v562 = vmul.f32 %v524, 0.044194173
        %v563 = vmul.f32 %v527, 0.044194173
        %v564 = vmul.f32 %v532, 0.044194173
        %v565 = vmul.f32 %v535, 0.044194173
        %v566 = vmul.f32 %v540, 0.044194173
        %v567 = vmul.f32 %v543, 0.044194173
        %v568 = vmul.f32 %v548, 0.044194173
        %v569 = vmul.f32 %v551, 0.044194173
        %570 = vst [vmem:[#allocation5] sm:$0xff] %v554
        %571 = vst [vmem:[#allocation5 + $0x8] sm:$0xff] %v555
        %572 = vst [vmem:[#allocation5 + $0x10] sm:$0xff] %v556
        %573 = vst [vmem:[#allocation5 + $0x18] sm:$0xff] %v557
        %574 = vst [vmem:[#allocation5 + $0x20] sm:$0xff] %v558
        %575 = vst [vmem:[#allocation5 + $0x28] sm:$0xff] %v559
        %576 = vst [vmem:[#allocation5 + $0x30] sm:$0xff] %v560
        %577 = vst [vmem:[#allocation5 + $0x38] sm:$0xff] %v561
        %578 = vst [vmem:[#allocation5 + $0x40] sm:$0xff] %v562
        %579 = vst [vmem:[#allocation5 + $0x48] sm:$0xff] %v563
        %580 = vst [vmem:[#allocation5 + $0x50] sm:$0xff] %v564
        %581 = vst [vmem:[#allocation5 + $0x58] sm:$0xff] %v565
        %582 = vst [vmem:[#allocation5 + $0x60] sm:$0xff] %v566
        %583 = vst [vmem:[#allocation5 + $0x68] sm:$0xff] %v567
        %584 = vst [vmem:[#allocation5 + $0x70] sm:$0xff] %v568
        %585 = vst [vmem:[#allocation5 + $0x78] sm:$0xff] %v569
        %v586 = vld [vmem:[#allocation2] sm:$0xff]
        %v587 = vld [vmem:[#allocation2 + $0x8] sm:$0xff]
        %v588 = vld [vmem:[#allocation2 + $0x10] sm:$0xff]
        %v589 = vld [vmem:[#allocation2 + $0x18] sm:$0xff]
        %v590 = vld [vmem:[#allocation2 + $0x20] sm:$0xff]
        %v591 = vld [vmem:[#allocation2 + $0x28] sm:$0xff]
        %v592 = vld [vmem:[#allocation2 + $0x30] sm:$0xff]
        %v593 = vld [vmem:[#allocation2 + $0x38] sm:$0xff]
        %v594 = vld [vmem:[#allocation2 + $0x40] sm:$0xff]
        %v595 = vld [vmem:[#allocation2 + $0x48] sm:$0xff]
        %v596 = vld [vmem:[#allocation2 + $0x50] sm:$0xff]
        %v597 = vld [vmem:[#allocation2 + $0x58] sm:$0xff]
        %v598 = vld [vmem:[#allocation2 + $0x60] sm:$0xff]
        %v599 = vld [vmem:[#allocation2 + $0x68] sm:$0xff]
        %v600 = vld [vmem:[#allocation2 + $0x70] sm:$0xff]
        %v601 = vld [vmem:[#allocation2 + $0x78] sm:$0xff]
        %602 = vmax.xlane.f32.xlu0 %v554
        %v603 = vpop.xlane.xlu0 %602
        %604 = vmax.xlane.f32.xlu0 %v555
        %v605 = vpop.xlane.xlu0 %604
        %606 = vmax.xlane.f32.xlu0 %v556
        %v607 = vpop.xlane.xlu0 %606
        %608 = vmax.xlane.f32.xlu0 %v557
        %v609 = vpop.xlane.xlu0 %608
        %610 = vmax.xlane.f32.xlu0 %v558
        %v611 = vpop.xlane.xlu0 %610
        %612 = vmax.xlane.f32.xlu0 %v559
        %v613 = vpop.xlane.xlu0 %612
        %614 = vmax.xlane.f32.xlu0 %v560
        %v615 = vpop.xlane.xlu0 %614
        %616 = vmax.xlane.f32.xlu0 %v561
        %v617 = vpop.xlane.xlu0 %616
        %618 = vmax.xlane.f32.xlu0 %v562
        %v619 = vpop.xlane.xlu0 %618
        %620 = vmax.xlane.f32.xlu0 %v563
        %v621 = vpop.xlane.xlu0 %620
        %622 = vmax.xlane.f32.xlu0 %v564
        %v623 = vpop.xlane.xlu0 %622
        %624 = vmax.xlane.f32.xlu0 %v565
        %v625 = vpop.xlane.xlu0 %624
        %626 = vmax.xlane.f32.xlu0 %v566
        %v627 = vpop.xlane.xlu0 %626
        %628 = vmax.xlane.f32.xlu0 %v567
        %v629 = vpop.xlane.xlu0 %628
        %630 = vmax.xlane.f32.xlu0 %v568
        %v631 = vpop.xlane.xlu0 %630
        %632 = vmax.xlane.f32.xlu0 %v569
        %v633 = vpop.xlane.xlu0 %632
        %v634 = vmax.f32 %v586, %v603
        %v635 = vmax.f32 %v587, %v605
        %v636 = vmax.f32 %v588, %v607
        %v637 = vmax.f32 %v589, %v609
        %v638 = vmax.f32 %v590, %v611
        %v639 = vmax.f32 %v591, %v613
        %v640 = vmax.f32 %v592, %v615
        %v641 = vmax.f32 %v593, %v617
        %v642 = vmax.f32 %v594, %v619
        %v643 = vmax.f32 %v595, %v621
        %v644 = vmax.f32 %v596, %v623
        %v645 = vmax.f32 %v597, %v625
        %v646 = vmax.f32 %v598, %v627
        %v647 = vmax.f32 %v599, %v629
        %v648 = vmax.f32 %v600, %v631
        %v649 = vmax.f32 %v601, %v633
        %v650 = vsub.f32 %v586, %v634
        %v651 = vsub.f32 %v587, %v635
        %v652 = vsub.f32 %v588, %v636
        %v653 = vsub.f32 %v589, %v637
        %v654 = vsub.f32 %v590, %v638
        %v655 = vsub.f32 %v591, %v639
        %v656 = vsub.f32 %v592, %v640
        %v657 = vsub.f32 %v593, %v641
        %v658 = vsub.f32 %v594, %v642
        %v659 = vsub.f32 %v595, %v643
        %v660 = vsub.f32 %v596, %v644
        %v661 = vsub.f32 %v597, %v645
        %v662 = vsub.f32 %v598, %v646
        %v663 = vsub.f32 %v599, %v647
        %v664 = vsub.f32 %v600, %v648
        %v665 = vsub.f32 %v601, %v649
        %v666 = vmul.f32 %v650, 1.442695
        %v667 = vpow.pop %v666
        %v668 = vmul.f32 %v651, 1.442695
        %v669 = vpow.pop %v668
        %v670 = vmul.f32 %v652, 1.442695
        %v671 = vpow.pop %v670
        %v672 = vmul.f32 %v653, 1.442695
        %v673 = vpow.pop %v672
        %v674 = vmul.f32 %v654, 1.442695
        %v675 = vpow.pop %v674
        %v676 = vmul.f32 %v655, 1.442695
        %v677 = vpow.pop %v676
        %v678 = vmul.f32 %v656, 1.442695
        %v679 = vpow.pop %v678
        %v680 = vmul.f32 %v657, 1.442695
        %v681 = vpow.pop %v680
        %v682 = vmul.f32 %v658, 1.442695
        %v683 = vpow.pop %v682
        %v684 = vmul.f32 %v659, 1.442695
        %v685 = vpow.pop %v684
        %v686 = vmul.f32 %v660, 1.442695
        %v687 = vpow.pop %v686
        %v688 = vmul.f32 %v661, 1.442695
        %v689 = vpow.pop %v688
        %v690 = vmul.f32 %v662, 1.442695
        %v691 = vpow.pop %v690
        %v692 = vmul.f32 %v663, 1.442695
        %v693 = vpow.pop %v692
        %v694 = vmul.f32 %v664, 1.442695
        %v695 = vpow.pop %v694
        %v696 = vmul.f32 %v665, 1.442695
        %v697 = vpow.pop %v696
        %699 = vset.pattern.permute.xlu0 0
        %700 = vperm.xlu0 %699, %v634
        %v701 = vpop.permute.xlu0 %700
        %704 = vset.pattern.permute.xlu0 0
        %705 = vperm.xlu0 %704, %v635
        %v706 = vpop.permute.xlu0 %705
        %709 = vset.pattern.permute.xlu0 0
        %710 = vperm.xlu0 %709, %v636
        %v711 = vpop.permute.xlu0 %710
        %714 = vset.pattern.permute.xlu0 0
        %715 = vperm.xlu0 %714, %v637
        %v716 = vpop.permute.xlu0 %715
        %719 = vset.pattern.permute.xlu0 0
        %720 = vperm.xlu0 %719, %v638
        %v721 = vpop.permute.xlu0 %720
        %724 = vset.pattern.permute.xlu0 0
        %725 = vperm.xlu0 %724, %v639
        %v726 = vpop.permute.xlu0 %725
        %729 = vset.pattern.permute.xlu0 0
        %730 = vperm.xlu0 %729, %v640
        %v731 = vpop.permute.xlu0 %730
        %734 = vset.pattern.permute.xlu0 0
        %735 = vperm.xlu0 %734, %v641
        %v736 = vpop.permute.xlu0 %735
        %739 = vset.pattern.permute.xlu0 0
        %740 = vperm.xlu0 %739, %v642
        %v741 = vpop.permute.xlu0 %740
        %744 = vset.pattern.permute.xlu0 0
        %745 = vperm.xlu0 %744, %v643
        %v746 = vpop.permute.xlu0 %745
        %749 = vset.pattern.permute.xlu0 0
        %750 = vperm.xlu0 %749, %v644
        %v751 = vpop.permute.xlu0 %750
        %754 = vset.pattern.permute.xlu0 0
        %755 = vperm.xlu0 %754, %v645
        %v756 = vpop.permute.xlu0 %755
        %759 = vset.pattern.permute.xlu0 0
        %760 = vperm.xlu0 %759, %v646
        %v761 = vpop.permute.xlu0 %760
        %764 = vset.pattern.permute.xlu0 0
        %765 = vperm.xlu0 %764, %v647
        %v766 = vpop.permute.xlu0 %765
        %769 = vset.pattern.permute.xlu0 0
        %770 = vperm.xlu0 %769, %v648
        %v771 = vpop.permute.xlu0 %770
        %774 = vset.pattern.permute.xlu0 0
        %775 = vperm.xlu0 %774, %v649
        %v776 = vpop.permute.xlu0 %775
        %v778 = vsub.f32 %v554, %v701
        %v779 = vsub.f32 %v555, %v706
        %v780 = vsub.f32 %v556, %v711
        %v781 = vsub.f32 %v557, %v716
        %v782 = vsub.f32 %v558, %v721
        %v783 = vsub.f32 %v559, %v726
        %v784 = vsub.f32 %v560, %v731
        %v785 = vsub.f32 %v561, %v736
        %v786 = vsub.f32 %v562, %v741
        %v787 = vsub.f32 %v563, %v746
        %v788 = vsub.f32 %v564, %v751
        %v789 = vsub.f32 %v565, %v756
        %v790 = vsub.f32 %v566, %v761
        %v791 = vsub.f32 %v567, %v766
        %v792 = vsub.f32 %v568, %v771
        %v793 = vsub.f32 %v569, %v776
        %v794 = vmul.f32 %v778, 1.442695
        %v795 = vpow.pop %v794
        %v796 = vmul.f32 %v779, 1.442695
        %v797 = vpow.pop %v796
        %v798 = vmul.f32 %v780, 1.442695
        %v799 = vpow.pop %v798
        %v800 = vmul.f32 %v781, 1.442695
        %v801 = vpow.pop %v800
        %v802 = vmul.f32 %v782, 1.442695
        %v803 = vpow.pop %v802
        %v804 = vmul.f32 %v783, 1.442695
        %v805 = vpow.pop %v804
        %v806 = vmul.f32 %v784, 1.442695
        %v807 = vpow.pop %v806
        %v808 = vmul.f32 %v785, 1.442695
        %v809 = vpow.pop %v808
        %v810 = vmul.f32 %v786, 1.442695
        %v811 = vpow.pop %v810
        %v812 = vmul.f32 %v787, 1.442695
        %v813 = vpow.pop %v812
        %v814 = vmul.f32 %v788, 1.442695
        %v815 = vpow.pop %v814
        %v816 = vmul.f32 %v789, 1.442695
        %v817 = vpow.pop %v816
        %v818 = vmul.f32 %v790, 1.442695
        %v819 = vpow.pop %v818
        %v820 = vmul.f32 %v791, 1.442695
        %v821 = vpow.pop %v820
        %v822 = vmul.f32 %v792, 1.442695
        %v823 = vpow.pop %v822
        %v824 = vmul.f32 %v793, 1.442695
        %v825 = vpow.pop %v824
        %v826 = vld [vmem:[#allocation3] sm:$0xff]
        %v827 = vld [vmem:[#allocation3 + $0x8] sm:$0xff]
        %v828 = vld [vmem:[#allocation3 + $0x10] sm:$0xff]
        %v829 = vld [vmem:[#allocation3 + $0x18] sm:$0xff]
        %v830 = vld [vmem:[#allocation3 + $0x20] sm:$0xff]
        %v831 = vld [vmem:[#allocation3 + $0x28] sm:$0xff]
        %v832 = vld [vmem:[#allocation3 + $0x30] sm:$0xff]
        %v833 = vld [vmem:[#allocation3 + $0x38] sm:$0xff]
        %v834 = vld [vmem:[#allocation3 + $0x40] sm:$0xff]
        %v835 = vld [vmem:[#allocation3 + $0x48] sm:$0xff]
        %v836 = vld [vmem:[#allocation3 + $0x50] sm:$0xff]
        %v837 = vld [vmem:[#allocation3 + $0x58] sm:$0xff]
        %v838 = vld [vmem:[#allocation3 + $0x60] sm:$0xff]
        %v839 = vld [vmem:[#allocation3 + $0x68] sm:$0xff]
        %v840 = vld [vmem:[#allocation3 + $0x70] sm:$0xff]
        %v841 = vld [vmem:[#allocation3 + $0x78] sm:$0xff]
        %v842 = vmul.f32 %v667, %v826
        %v843 = vmul.f32 %v669, %v827
        %v844 = vmul.f32 %v671, %v828
        %v845 = vmul.f32 %v673, %v829
        %v846 = vmul.f32 %v675, %v830
        %v847 = vmul.f32 %v677, %v831
        %v848 = vmul.f32 %v679, %v832
        %v849 = vmul.f32 %v681, %v833
        %v850 = vmul.f32 %v683, %v834
        %v851 = vmul.f32 %v685, %v835
        %v852 = vmul.f32 %v687, %v836
        %v853 = vmul.f32 %v689, %v837
        %v854 = vmul.f32 %v691, %v838
        %v855 = vmul.f32 %v693, %v839
        %v856 = vmul.f32 %v695, %v840
        %v857 = vmul.f32 %v697, %v841
        %858 = vadd.xlane.f32.xlu0 %v795
        %v859 = vpop.xlane.xlu0 %858
        %860 = vadd.xlane.f32.xlu0 %v797
        %v861 = vpop.xlane.xlu0 %860
        %862 = vadd.xlane.f32.xlu0 %v799
        %v863 = vpop.xlane.xlu0 %862
        %864 = vadd.xlane.f32.xlu0 %v801
        %v865 = vpop.xlane.xlu0 %864
        %866 = vadd.xlane.f32.xlu0 %v803
        %v867 = vpop.xlane.xlu0 %866
        %868 = vadd.xlane.f32.xlu0 %v805
        %v869 = vpop.xlane.xlu0 %868
        %870 = vadd.xlane.f32.xlu0 %v807
        %v871 = vpop.xlane.xlu0 %870
        %872 = vadd.xlane.f32.xlu0 %v809
        %v873 = vpop.xlane.xlu0 %872
        %874 = vadd.xlane.f32.xlu0 %v811
        %v875 = vpop.xlane.xlu0 %874
        %876 = vadd.xlane.f32.xlu0 %v813
        %v877 = vpop.xlane.xlu0 %876
        %878 = vadd.xlane.f32.xlu0 %v815
        %v879 = vpop.xlane.xlu0 %878
        %880 = vadd.xlane.f32.xlu0 %v817
        %v881 = vpop.xlane.xlu0 %880
        %882 = vadd.xlane.f32.xlu0 %v819
        %v883 = vpop.xlane.xlu0 %882
        %884 = vadd.xlane.f32.xlu0 %v821
        %v885 = vpop.xlane.xlu0 %884
        %886 = vadd.xlane.f32.xlu0 %v823
        %v887 = vpop.xlane.xlu0 %886
        %888 = vadd.xlane.f32.xlu0 %v825
        %v889 = vpop.xlane.xlu0 %888
        %v890 = vadd.f32 %v842, %v859
        %v891 = vadd.f32 %v843, %v861
        %v892 = vadd.f32 %v844, %v863
        %v893 = vadd.f32 %v845, %v865
        %v894 = vadd.f32 %v846, %v867
        %v895 = vadd.f32 %v847, %v869
        %v896 = vadd.f32 %v848, %v871
        %v897 = vadd.f32 %v849, %v873
        %v898 = vadd.f32 %v850, %v875
        %v899 = vadd.f32 %v851, %v877
        %v900 = vadd.f32 %v852, %v879
        %v901 = vadd.f32 %v853, %v881
        %v902 = vadd.f32 %v854, %v883
        %v903 = vadd.f32 %v855, %v885
        %v904 = vadd.f32 %v856, %v887
        %v905 = vadd.f32 %v857, %v889
        %vm906 = vcmask 7168
        %907 = vst.msk [vmem:[#allocation3] sm:$0xff] %vm906, %v890
        %908 = vst.msk [vmem:[#allocation3 + $0x8] sm:$0xff] %vm906, %v891
        %909 = vst.msk [vmem:[#allocation3 + $0x10] sm:$0xff] %vm906, %v892
        %910 = vst.msk [vmem:[#allocation3 + $0x18] sm:$0xff] %vm906, %v893
        %911 = vst.msk [vmem:[#allocation3 + $0x20] sm:$0xff] %vm906, %v894
        %912 = vst.msk [vmem:[#allocation3 + $0x28] sm:$0xff] %vm906, %v895
        %913 = vst.msk [vmem:[#allocation3 + $0x30] sm:$0xff] %vm906, %v896
        %914 = vst.msk [vmem:[#allocation3 + $0x38] sm:$0xff] %vm906, %v897
        %915 = vst.msk [vmem:[#allocation3 + $0x40] sm:$0xff] %vm906, %v898
        %916 = vst.msk [vmem:[#allocation3 + $0x48] sm:$0xff] %vm906, %v899
        %917 = vst.msk [vmem:[#allocation3 + $0x50] sm:$0xff] %vm906, %v900
        %918 = vst.msk [vmem:[#allocation3 + $0x58] sm:$0xff] %vm906, %v901
        %919 = vst.msk [vmem:[#allocation3 + $0x60] sm:$0xff] %vm906, %v902
        %920 = vst.msk [vmem:[#allocation3 + $0x68] sm:$0xff] %vm906, %v903
        %921 = vst.msk [vmem:[#allocation3 + $0x70] sm:$0xff] %vm906, %v904
        %922 = vst.msk [vmem:[#allocation3 + $0x78] sm:$0xff] %vm906, %v905
        %v923 = vld [vmem:[#allocation4] sm:$0xff]
        %v924 = vld [vmem:[#allocation4 + $0x8] sm:$0xff]
        %v925 = vld [vmem:[#allocation4 + $0x10] sm:$0xff]
        %v926 = vld [vmem:[#allocation4 + $0x18] sm:$0xff]
        %v927 = vld [vmem:[#allocation4 + $0x20] sm:$0xff]
        %v928 = vld [vmem:[#allocation4 + $0x28] sm:$0xff]
        %v929 = vld [vmem:[#allocation4 + $0x30] sm:$0xff]
        %v930 = vld [vmem:[#allocation4 + $0x38] sm:$0xff]
        %v931 = vld [vmem:[#allocation4 + $0x40] sm:$0xff]
        %v932 = vld [vmem:[#allocation4 + $0x48] sm:$0xff]
        %v933 = vld [vmem:[#allocation4 + $0x50] sm:$0xff]
        %v934 = vld [vmem:[#allocation4 + $0x58] sm:$0xff]
        %v935 = vld [vmem:[#allocation4 + $0x60] sm:$0xff]
        %v936 = vld [vmem:[#allocation4 + $0x68] sm:$0xff]
        %v937 = vld [vmem:[#allocation4 + $0x70] sm:$0xff]
        %v938 = vld [vmem:[#allocation4 + $0x78] sm:$0xff]
        %940 = vset.pattern.permute.xlu0 0
        %941 = vperm.xlu0 %940, %v667
        %v942 = vpop.permute.xlu0 %941
        %945 = vset.pattern.permute.xlu0 0
        %946 = vperm.xlu0 %945, %v669
        %v947 = vpop.permute.xlu0 %946
        %950 = vset.pattern.permute.xlu0 0
        %951 = vperm.xlu0 %950, %v671
        %v952 = vpop.permute.xlu0 %951
        %955 = vset.pattern.permute.xlu0 0
        %956 = vperm.xlu0 %955, %v673
        %v957 = vpop.permute.xlu0 %956
        %960 = vset.pattern.permute.xlu0 0
        %961 = vperm.xlu0 %960, %v675
        %v962 = vpop.permute.xlu0 %961
        %965 = vset.pattern.permute.xlu0 0
        %966 = vperm.xlu0 %965, %v677
        %v967 = vpop.permute.xlu0 %966
        %970 = vset.pattern.permute.xlu0 0
        %971 = vperm.xlu0 %970, %v679
        %v972 = vpop.permute.xlu0 %971
        %975 = vset.pattern.permute.xlu0 0
        %976 = vperm.xlu0 %975, %v681
        %v977 = vpop.permute.xlu0 %976
        %980 = vset.pattern.permute.xlu0 0
        %981 = vperm.xlu0 %980, %v683
        %v982 = vpop.permute.xlu0 %981
        %985 = vset.pattern.permute.xlu0 0
        %986 = vperm.xlu0 %985, %v685
        %v987 = vpop.permute.xlu0 %986
        %990 = vset.pattern.permute.xlu0 0
        %991 = vperm.xlu0 %990, %v687
        %v992 = vpop.permute.xlu0 %991
        %995 = vset.pattern.permute.xlu0 0
        %996 = vperm.xlu0 %995, %v689
        %v997 = vpop.permute.xlu0 %996
        %1000 = vset.pattern.permute.xlu0 0
        %1001 = vperm.xlu0 %1000, %v691
        %v1002 = vpop.permute.xlu0 %1001
        %1005 = vset.pattern.permute.xlu0 0
        %1006 = vperm.xlu0 %1005, %v693
        %v1007 = vpop.permute.xlu0 %1006
        %1010 = vset.pattern.permute.xlu0 0
        %1011 = vperm.xlu0 %1010, %v695
        %v1012 = vpop.permute.xlu0 %1011
        %1015 = vset.pattern.permute.xlu0 0
        %1016 = vperm.xlu0 %1015, %v697
        %v1017 = vpop.permute.xlu0 %1016
        %v1019 = vmul.f32 %v942, %v923
        %v1020 = vmul.f32 %v947, %v924
        %v1021 = vmul.f32 %v952, %v925
        %v1022 = vmul.f32 %v957, %v926
        %v1023 = vmul.f32 %v962, %v927
        %v1024 = vmul.f32 %v967, %v928
        %v1025 = vmul.f32 %v972, %v929
        %v1026 = vmul.f32 %v977, %v930
        %v1027 = vmul.f32 %v982, %v931
        %v1028 = vmul.f32 %v987, %v932
        %v1029 = vmul.f32 %v992, %v933
        %v1030 = vmul.f32 %v997, %v934
        %v1031 = vmul.f32 %v1002, %v935
        %v1032 = vmul.f32 %v1007, %v936
        %v1033 = vmul.f32 %v1012, %v937
        %v1034 = vmul.f32 %v1017, %v938
        %v1035 = vpack.c.bf16 %v797, %v795
        %v1036 = vpack.c.bf16 %v801, %v799
        %v1037 = vpack.c.bf16 %v805, %v803
        %v1038 = vpack.c.bf16 %v809, %v807
        %v1039 = vpack.c.bf16 %v813, %v811
        %v1040 = vpack.c.bf16 %v817, %v815
        %v1041 = vpack.c.bf16 %v821, %v819
        %v1042 = vpack.c.bf16 %v825, %v823
        %1043 = vmatprep.subr.bf16.mxu0 0
        %1044 = vmatpush1.bf16.msra.mxu0 %v441
        %1045 = vmatprep.subr.bf16.mxu0 0
        %1046 = vmatpush1.bf16.msra.mxu0 %v442
        %1047 = vmatprep.subr.bf16.mxu0 0
        %1048 = vmatpush1.bf16.msra.mxu0 %v443
        %1049 = vmatprep.subr.bf16.mxu0 0
        %1050 = vmatpush1.bf16.msra.mxu0 %v444
        %1051 = vmatprep.subr.bf16.mxu0 0
        %1052 = vmatpush1.bf16.msra.mxu0 %v445
        %1053 = vmatprep.subr.bf16.mxu0 0
        %1054 = vmatpush1.bf16.msra.mxu0 %v446
        %1055 = vmatprep.subr.bf16.mxu0 0
        %1056 = vmatpush1.bf16.msra.mxu0 %v447
        %1057 = vmatprep.subr.bf16.mxu0 0
        %1058 = vmatpush1.bf16.msra.mxu0 %v448
        %1059 = vmatprep.subr.bf16.mxu0 0
        %1060 = vmatpush1.bf16.msra.mxu0 0
        %1061 = vmatprep.subr.bf16.mxu0 0
        %1062 = vmatpush1.bf16.msra.mxu0 0
        %1063 = vmatprep.subr.bf16.mxu0 0
        %1064 = vmatpush1.bf16.msra.mxu0 0
        %1065 = vmatprep.subr.bf16.mxu0 0
        %1066 = vmatpush1.bf16.msra.mxu0 0
        %1067 = vmatprep.subr.bf16.mxu0 0
        %1068 = vmatpush1.bf16.msra.mxu0 0
        %1069 = vmatprep.subr.bf16.mxu0 0
        %1070 = vmatpush1.bf16.msra.mxu0 0
        %1071 = vmatprep.subr.bf16.mxu0 0
        %1072 = vmatpush1.bf16.msra.mxu0 0
        %1073 = vmatprep.subr.bf16.mxu0 0
        %1074 = vmatpush1.bf16.msra.mxu0 0
        %1075 = vmatprep.mubr.bf16.mxu0 0
        %1076 = vmatmul.mubr.bf16.gmra.mrb[0].mxu0 %v1035
        %v1077 = vpop.f32.mrb[0].mxu0
        %v1078 = vadd.f32 0.0, %v1077
        %v1079 = vpop.f32.mrb[0].mxu0
        %v1080 = vpop.f32.mrb[0].mxu0
        %v1081 = vadd.f32 0.0, %v1080
        %v1082 = vpop.f32.mrb[0].mxu0
        %1083 = vmatprep.mubr.bf16.mxu0 0
        %1084 = vmatmul.mubr.bf16.gmra.mrb[0].mxu0 %v1036
        %v1085 = vpop.f32.mrb[0].mxu0
        %v1086 = vadd.f32 0.0, %v1085
        %v1087 = vpop.f32.mrb[0].mxu0
        %v1088 = vpop.f32.mrb[0].mxu0
        %v1089 = vadd.f32 0.0, %v1088
        %v1090 = vpop.f32.mrb[0].mxu0
        %1091 = vmatprep.mubr.bf16.mxu0 0
        %1092 = vmatmul.mubr.bf16.gmra.mrb[0].mxu0 %v1037
        %v1093 = vpop.f32.mrb[0].mxu0
        %v1094 = vadd.f32 0.0, %v1093
        %v1095 = vpop.f32.mrb[0].mxu0
        %v1096 = vpop.f32.mrb[0].mxu0
        %v1097 = vadd.f32 0.0, %v1096
        %v1098 = vpop.f32.mrb[0].mxu0
        %1099 = vmatprep.mubr.bf16.mxu0 0
        %1100 = vmatmul.mubr.bf16.gmra.mrb[0].mxu0 %v1038
        %v1101 = vpop.f32.mrb[0].mxu0
        %v1102 = vadd.f32 0.0, %v1101
        %v1103 = vpop.f32.mrb[0].mxu0
        %v1104 = vpop.f32.mrb[0].mxu0
        %v1105 = vadd.f32 0.0, %v1104
        %v1106 = vpop.f32.mrb[0].mxu0
        %1107 = vmatprep.mubr.bf16.mxu0 0
        %1108 = vmatmul.mubr.bf16.gmra.mrb[0].mxu0 %v1039
        %v1109 = vpop.f32.mrb[0].mxu0
        %v1110 = vadd.f32 0.0, %v1109
        %v1111 = vpop.f32.mrb[0].mxu0
        %v1112 = vpop.f32.mrb[0].mxu0
        %v1113 = vadd.f32 0.0, %v1112
        %v1114 = vpop.f32.mrb[0].mxu0
        %1115 = vmatprep.mubr.bf16.mxu0 0
        %1116 = vmatmul.mubr.bf16.gmra.mrb[0].mxu0 %v1040
        %v1117 = vpop.f32.mrb[0].mxu0
        %v1118 = vadd.f32 0.0, %v1117
        %v1119 = vpop.f32.mrb[0].mxu0
        %v1120 = vpop.f32.mrb[0].mxu0
        %v1121 = vadd.f32 0.0, %v1120
        %v1122 = vpop.f32.mrb[0].mxu0
        %1123 = vmatprep.mubr.bf16.mxu0 0
        %1124 = vmatmul.mubr.bf16.gmra.mrb[0].mxu0 %v1041
        %v1125 = vpop.f32.mrb[0].mxu0
        %v1126 = vadd.f32 0.0, %v1125
        %v1127 = vpop.f32.mrb[0].mxu0
        %v1128 = vpop.f32.mrb[0].mxu0
        %v1129 = vadd.f32 0.0, %v1128
        %v1130 = vpop.f32.mrb[0].mxu0
        %1131 = vmatprep.mubr.bf16.mxu0 0
        %1132 = vmatmul.mubr.bf16.gmra.mrb[0].mxu0 %v1042
        %v1133 = vpop.f32.mrb[0].mxu0
        %v1134 = vadd.f32 0.0, %v1133
        %v1135 = vpop.f32.mrb[0].mxu0
        %v1136 = vpop.f32.mrb[0].mxu0
        %v1137 = vadd.f32 0.0, %v1136
        %v1138 = vpop.f32.mrb[0].mxu0
        %1139 = vdwg.mxu0
        %v1140 = vadd.f32 %v1019, %v1078
        %v1141 = vadd.f32 %v1020, %v1081
        %v1142 = vadd.f32 %v1021, %v1086
        %v1143 = vadd.f32 %v1022, %v1089
        %v1144 = vadd.f32 %v1023, %v1094
        %v1145 = vadd.f32 %v1024, %v1097
        %v1146 = vadd.f32 %v1025, %v1102
        %v1147 = vadd.f32 %v1026, %v1105
        %v1148 = vadd.f32 %v1027, %v1110
        %v1149 = vadd.f32 %v1028, %v1113
        %v1150 = vadd.f32 %v1029, %v1118
        %v1151 = vadd.f32 %v1030, %v1121
        %v1152 = vadd.f32 %v1031, %v1126
        %v1153 = vadd.f32 %v1032, %v1129
        %v1154 = vadd.f32 %v1033, %v1134
        %v1155 = vadd.f32 %v1034, %v1137
        %1156 = vst [vmem:[#allocation4] sm:$0xff] %v1140
        %1157 = vst [vmem:[#allocation4 + $0x8] sm:$0xff] %v1141
        %1158 = vst [vmem:[#allocation4 + $0x10] sm:$0xff] %v1142
        %1159 = vst [vmem:[#allocation4 + $0x18] sm:$0xff] %v1143
        %1160 = vst [vmem:[#allocation4 + $0x20] sm:$0xff] %v1144
        %1161 = vst [vmem:[#allocation4 + $0x28] sm:$0xff] %v1145
        %1162 = vst [vmem:[#allocation4 + $0x30] sm:$0xff] %v1146
        %1163 = vst [vmem:[#allocation4 + $0x38] sm:$0xff] %v1147
        %1164 = vst [vmem:[#allocation4 + $0x40] sm:$0xff] %v1148
        %1165 = vst [vmem:[#allocation4 + $0x48] sm:$0xff] %v1149
        %1166 = vst [vmem:[#allocation4 + $0x50] sm:$0xff] %v1150
        %1167 = vst [vmem:[#allocation4 + $0x58] sm:$0xff] %v1151
        %1168 = vst [vmem:[#allocation4 + $0x60] sm:$0xff] %v1152
        %1169 = vst [vmem:[#allocation4 + $0x68] sm:$0xff] %v1153
        %1170 = vst [vmem:[#allocation4 + $0x70] sm:$0xff] %v1154
        %1171 = vst [vmem:[#allocation4 + $0x78] sm:$0xff] %v1155
        %1172 = vst.msk [vmem:[#allocation2] sm:$0xff] %vm906, %v634
        %1173 = vst.msk [vmem:[#allocation2 + $0x8] sm:$0xff] %vm906, %v635
        %1174 = vst.msk [vmem:[#allocation2 + $0x10] sm:$0xff] %vm906, %v636
        %1175 = vst.msk [vmem:[#allocation2 + $0x18] sm:$0xff] %vm906, %v637
        %1176 = vst.msk [vmem:[#allocation2 + $0x20] sm:$0xff] %vm906, %v638
        %1177 = vst.msk [vmem:[#allocation2 + $0x28] sm:$0xff] %vm906, %v639
        %1178 = vst.msk [vmem:[#allocation2 + $0x30] sm:$0xff] %vm906, %v640
        %1179 = vst.msk [vmem:[#allocation2 + $0x38] sm:$0xff] %vm906, %v641
        %1180 = vst.msk [vmem:[#allocation2 + $0x40] sm:$0xff] %vm906, %v642
        %1181 = vst.msk [vmem:[#allocation2 + $0x48] sm:$0xff] %vm906, %v643
        %1182 = vst.msk [vmem:[#allocation2 + $0x50] sm:$0xff] %vm906, %v644
        %1183 = vst.msk [vmem:[#allocation2 + $0x58] sm:$0xff] %vm906, %v645
        %1184 = vst.msk [vmem:[#allocation2 + $0x60] sm:$0xff] %vm906, %v646
        %1185 = vst.msk [vmem:[#allocation2 + $0x68] sm:$0xff] %vm906, %v647
        %1186 = vst.msk [vmem:[#allocation2 + $0x70] sm:$0xff] %vm906, %v648
        %1187 = vst.msk [vmem:[#allocation2 + $0x78] sm:$0xff] %vm906, %v649
        // Predicated region
        $region41: #{tpu_custom_call.1} parent=27 // pred_check
          %p1188 = pneg %p276
        $region42: #{tpu_custom_call.1} parent=27 // pred_check_branch
          %1190 = sbr.rel (%p1188) target = $region44
        $region43: #{tpu_custom_call.1} parent=27 // pred_region
          %v1191 = vld [vmem:[#allocation3] sm:$0xff]
          %v1192 = vld [vmem:[#allocation3 + $0x8] sm:$0xff]
          %v1193 = vld [vmem:[#allocation3 + $0x10] sm:$0xff]
          %v1194 = vld [vmem:[#allocation3 + $0x18] sm:$0xff]
          %v1195 = vld [vmem:[#allocation3 + $0x20] sm:$0xff]
          %v1196 = vld [vmem:[#allocation3 + $0x28] sm:$0xff]
          %v1197 = vld [vmem:[#allocation3 + $0x30] sm:$0xff]
          %v1198 = vld [vmem:[#allocation3 + $0x38] sm:$0xff]
          %v1199 = vld [vmem:[#allocation3 + $0x40] sm:$0xff]
          %v1200 = vld [vmem:[#allocation3 + $0x48] sm:$0xff]
          %v1201 = vld [vmem:[#allocation3 + $0x50] sm:$0xff]
          %v1202 = vld [vmem:[#allocation3 + $0x58] sm:$0xff]
          %v1203 = vld [vmem:[#allocation3 + $0x60] sm:$0xff]
          %v1204 = vld [vmem:[#allocation3 + $0x68] sm:$0xff]
          %v1205 = vld [vmem:[#allocation3 + $0x70] sm:$0xff]
          %v1206 = vld [vmem:[#allocation3 + $0x78] sm:$0xff]
          %v1207 = vrcp.pop %v1191
          %v1208 = vrcp.pop %v1192
          %v1209 = vrcp.pop %v1193
          %v1210 = vrcp.pop %v1194
          %v1211 = vrcp.pop %v1195
          %v1212 = vrcp.pop %v1196
          %v1213 = vrcp.pop %v1197
          %v1214 = vrcp.pop %v1198
          %v1215 = vrcp.pop %v1199
          %v1216 = vrcp.pop %v1200
          %v1217 = vrcp.pop %v1201
          %v1218 = vrcp.pop %v1202
          %v1219 = vrcp.pop %v1203
          %v1220 = vrcp.pop %v1204
          %v1221 = vrcp.pop %v1205
          %v1222 = vrcp.pop %v1206
          %v1223 = vmul.f32 %v1191, %v1207
          %v1224 = vmul.f32 %v1192, %v1208
          %v1225 = vmul.f32 %v1193, %v1209
          %v1226 = vmul.f32 %v1194, %v1210
          %v1227 = vmul.f32 %v1195, %v1211
          %v1228 = vmul.f32 %v1196, %v1212
          %v1229 = vmul.f32 %v1197, %v1213
          %v1230 = vmul.f32 %v1198, %v1214
          %v1231 = vmul.f32 %v1199, %v1215
          %v1232 = vmul.f32 %v1200, %v1216
          %v1233 = vmul.f32 %v1201, %v1217
          %v1234 = vmul.f32 %v1202, %v1218
          %v1235 = vmul.f32 %v1203, %v1219
          %v1236 = vmul.f32 %v1204, %v1220
          %v1237 = vmul.f32 %v1205, %v1221
          %v1238 = vmul.f32 %v1206, %v1222
          %v1239 = vsub.f32 2.0, %v1223
          %v1240 = vsub.f32 2.0, %v1224
          %v1241 = vsub.f32 2.0, %v1225
          %v1242 = vsub.f32 2.0, %v1226
          %v1243 = vsub.f32 2.0, %v1227
          %v1244 = vsub.f32 2.0, %v1228
          %v1245 = vsub.f32 2.0, %v1229
          %v1246 = vsub.f32 2.0, %v1230
          %v1247 = vsub.f32 2.0, %v1231
          %v1248 = vsub.f32 2.0, %v1232
          %v1249 = vsub.f32 2.0, %v1233
          %v1250 = vsub.f32 2.0, %v1234
          %v1251 = vsub.f32 2.0, %v1235
          %v1252 = vsub.f32 2.0, %v1236
          %v1253 = vsub.f32 2.0, %v1237
          %v1254 = vsub.f32 2.0, %v1238
          %v1255 = vmul.f32 %v1207, %v1239
          %v1256 = vmul.f32 %v1208, %v1240
          %v1257 = vmul.f32 %v1209, %v1241
          %v1258 = vmul.f32 %v1210, %v1242
          %v1259 = vmul.f32 %v1211, %v1243
          %v1260 = vmul.f32 %v1212, %v1244
          %v1261 = vmul.f32 %v1213, %v1245
          %v1262 = vmul.f32 %v1214, %v1246
          %v1263 = vmul.f32 %v1215, %v1247
          %v1264 = vmul.f32 %v1216, %v1248
          %v1265 = vmul.f32 %v1217, %v1249
          %v1266 = vmul.f32 %v1218, %v1250
          %v1267 = vmul.f32 %v1219, %v1251
          %v1268 = vmul.f32 %v1220, %v1252
          %v1269 = vmul.f32 %v1221, %v1253
          %v1270 = vmul.f32 %v1222, %v1254
          %v1271 = vld [vmem:[#allocation4] sm:$0xff]
          %v1272 = vld [vmem:[#allocation4 + $0x8] sm:$0xff]
          %v1273 = vld [vmem:[#allocation4 + $0x10] sm:$0xff]
          %v1274 = vld [vmem:[#allocation4 + $0x18] sm:$0xff]
          %v1275 = vld [vmem:[#allocation4 + $0x20] sm:$0xff]
          %v1276 = vld [vmem:[#allocation4 + $0x28] sm:$0xff]
          %v1277 = vld [vmem:[#allocation4 + $0x30] sm:$0xff]
          %v1278 = vld [vmem:[#allocation4 + $0x38] sm:$0xff]
          %v1279 = vld [vmem:[#allocation4 + $0x40] sm:$0xff]
          %v1280 = vld [vmem:[#allocation4 + $0x48] sm:$0xff]
          %v1281 = vld [vmem:[#allocation4 + $0x50] sm:$0xff]
          %v1282 = vld [vmem:[#allocation4 + $0x58] sm:$0xff]
          %v1283 = vld [vmem:[#allocation4 + $0x60] sm:$0xff]
          %v1284 = vld [vmem:[#allocation4 + $0x68] sm:$0xff]
          %v1285 = vld [vmem:[#allocation4 + $0x70] sm:$0xff]
          %v1286 = vld [vmem:[#allocation4 + $0x78] sm:$0xff]
          %1288 = vset.pattern.permute.xlu0 0
          %1289 = vperm.xlu0 %1288, %v1255
          %v1290 = vpop.permute.xlu0 %1289
          %1293 = vset.pattern.permute.xlu0 0
          %1294 = vperm.xlu0 %1293, %v1256
          %v1295 = vpop.permute.xlu0 %1294
          %1298 = vset.pattern.permute.xlu0 0
          %1299 = vperm.xlu0 %1298, %v1257
          %v1300 = vpop.permute.xlu0 %1299
          %1303 = vset.pattern.permute.xlu0 0
          %1304 = vperm.xlu0 %1303, %v1258
          %v1305 = vpop.permute.xlu0 %1304
          %1308 = vset.pattern.permute.xlu0 0
          %1309 = vperm.xlu0 %1308, %v1259
          %v1310 = vpop.permute.xlu0 %1309
          %1313 = vset.pattern.permute.xlu0 0
          %1314 = vperm.xlu0 %1313, %v1260
          %v1315 = vpop.permute.xlu0 %1314
          %1318 = vset.pattern.permute.xlu0 0
          %1319 = vperm.xlu0 %1318, %v1261
          %v1320 = vpop.permute.xlu0 %1319
          %1323 = vset.pattern.permute.xlu0 0
          %1324 = vperm.xlu0 %1323, %v1262
          %v1325 = vpop.permute.xlu0 %1324
          %1328 = vset.pattern.permute.xlu0 0
          %1329 = vperm.xlu0 %1328, %v1263
          %v1330 = vpop.permute.xlu0 %1329
          %1333 = vset.pattern.permute.xlu0 0
          %1334 = vperm.xlu0 %1333, %v1264
          %v1335 = vpop.permute.xlu0 %1334
          %1338 = vset.pattern.permute.xlu0 0
          %1339 = vperm.xlu0 %1338, %v1265
          %v1340 = vpop.permute.xlu0 %1339
          %1343 = vset.pattern.permute.xlu0 0
          %1344 = vperm.xlu0 %1343, %v1266
          %v1345 = vpop.permute.xlu0 %1344
          %1348 = vset.pattern.permute.xlu0 0
          %1349 = vperm.xlu0 %1348, %v1267
          %v1350 = vpop.permute.xlu0 %1349
          %1353 = vset.pattern.permute.xlu0 0
          %1354 = vperm.xlu0 %1353, %v1268
          %v1355 = vpop.permute.xlu0 %1354
          %1358 = vset.pattern.permute.xlu0 0
          %1359 = vperm.xlu0 %1358, %v1269
          %v1360 = vpop.permute.xlu0 %1359
          %1363 = vset.pattern.permute.xlu0 0
          %1364 = vperm.xlu0 %1363, %v1270
          %v1365 = vpop.permute.xlu0 %1364
          %v1367 = vmul.f32 %v1271, %v1290
          %v1368 = vmul.f32 %v1272, %v1295
          %v1369 = vmul.f32 %v1273, %v1300
          %v1370 = vmul.f32 %v1274, %v1305
          %v1371 = vmul.f32 %v1275, %v1310
          %v1372 = vmul.f32 %v1276, %v1315
          %v1373 = vmul.f32 %v1277, %v1320
          %v1374 = vmul.f32 %v1278, %v1325
          %v1375 = vmul.f32 %v1279, %v1330
          %v1376 = vmul.f32 %v1280, %v1335
          %v1377 = vmul.f32 %v1281, %v1340
          %v1378 = vmul.f32 %v1282, %v1345
          %v1379 = vmul.f32 %v1283, %v1350
          %v1380 = vmul.f32 %v1284, %v1355
          %v1381 = vmul.f32 %v1285, %v1360
          %v1382 = vmul.f32 %v1286, %v1365
          %1383 = vst [vmem:[%s263] sm:$0xff] %v1367
          %1384 = vst [vmem:[%s263 + $0x8] sm:$0xff] %v1368
          %1385 = vst [vmem:[%s263 + $0x10] sm:$0xff] %v1369
          %1386 = vst [vmem:[%s263 + $0x18] sm:$0xff] %v1370
          %1387 = vst [vmem:[%s263 + $0x20] sm:$0xff] %v1371
          %1388 = vst [vmem:[%s263 + $0x28] sm:$0xff] %v1372
          %1389 = vst [vmem:[%s263 + $0x30] sm:$0xff] %v1373
          %1390 = vst [vmem:[%s263 + $0x38] sm:$0xff] %v1374
          %1391 = vst [vmem:[%s263 + $0x40] sm:$0xff] %v1375
          %1392 = vst [vmem:[%s263 + $0x48] sm:$0xff] %v1376
          %1393 = vst [vmem:[%s263 + $0x50] sm:$0xff] %v1377
          %1394 = vst [vmem:[%s263 + $0x58] sm:$0xff] %v1378
          %1395 = vst [vmem:[%s263 + $0x60] sm:$0xff] %v1379
          %1396 = vst [vmem:[%s263 + $0x68] sm:$0xff] %v1380
          %1397 = vst [vmem:[%s263 + $0x70] sm:$0xff] %v1381
          %1398 = vst [vmem:[%s263 + $0x78] sm:$0xff] %v1382
          %v1399 = vld [vmem:[#allocation5] sm:$0xff]
          %v1400 = vld [vmem:[#allocation5 + $0x8] sm:$0xff]
          %v1401 = vld [vmem:[#allocation5 + $0x10] sm:$0xff]
          %v1402 = vld [vmem:[#allocation5 + $0x18] sm:$0xff]
          %v1403 = vld [vmem:[#allocation5 + $0x20] sm:$0xff]
          %v1404 = vld [vmem:[#allocation5 + $0x28] sm:$0xff]
          %v1405 = vld [vmem:[#allocation5 + $0x30] sm:$0xff]
          %v1406 = vld [vmem:[#allocation5 + $0x38] sm:$0xff]
          %v1407 = vld [vmem:[#allocation5 + $0x40] sm:$0xff]
          %v1408 = vld [vmem:[#allocation5 + $0x48] sm:$0xff]
          %v1409 = vld [vmem:[#allocation5 + $0x50] sm:$0xff]
          %v1410 = vld [vmem:[#allocation5 + $0x58] sm:$0xff]
          %v1411 = vld [vmem:[#allocation5 + $0x60] sm:$0xff]
          %v1412 = vld [vmem:[#allocation5 + $0x68] sm:$0xff]
          %v1413 = vld [vmem:[#allocation5 + $0x70] sm:$0xff]
          %v1414 = vld [vmem:[#allocation5 + $0x78] sm:$0xff]
          %v1415 = vld [vmem:[#allocation2] sm:$0xff]
          %v1416 = vld [vmem:[#allocation2 + $0x8] sm:$0xff]
          %v1417 = vld [vmem:[#allocation2 + $0x10] sm:$0xff]
          %v1418 = vld [vmem:[#allocation2 + $0x18] sm:$0xff]
          %v1419 = vld [vmem:[#allocation2 + $0x20] sm:$0xff]
          %v1420 = vld [vmem:[#allocation2 + $0x28] sm:$0xff]
          %v1421 = vld [vmem:[#allocation2 + $0x30] sm:$0xff]
          %v1422 = vld [vmem:[#allocation2 + $0x38] sm:$0xff]
          %v1423 = vld [vmem:[#allocation2 + $0x40] sm:$0xff]
          %v1424 = vld [vmem:[#allocation2 + $0x48] sm:$0xff]
          %v1425 = vld [vmem:[#allocation2 + $0x50] sm:$0xff]
          %v1426 = vld [vmem:[#allocation2 + $0x58] sm:$0xff]
          %v1427 = vld [vmem:[#allocation2 + $0x60] sm:$0xff]
          %v1428 = vld [vmem:[#allocation2 + $0x68] sm:$0xff]
          %v1429 = vld [vmem:[#allocation2 + $0x70] sm:$0xff]
          %v1430 = vld [vmem:[#allocation2 + $0x78] sm:$0xff]
          %1432 = vset.pattern.permute.xlu0 0
          %1433 = vperm.xlu0 %1432, %v1415
          %v1434 = vpop.permute.xlu0 %1433
          %1437 = vset.pattern.permute.xlu0 0
          %1438 = vperm.xlu0 %1437, %v1416
          %v1439 = vpop.permute.xlu0 %1438
          %1442 = vset.pattern.permute.xlu0 0
          %1443 = vperm.xlu0 %1442, %v1417
          %v1444 = vpop.permute.xlu0 %1443
          %1447 = vset.pattern.permute.xlu0 0
          %1448 = vperm.xlu0 %1447, %v1418
          %v1449 = vpop.permute.xlu0 %1448
          %1452 = vset.pattern.permute.xlu0 0
          %1453 = vperm.xlu0 %1452, %v1419
          %v1454 = vpop.permute.xlu0 %1453
          %1457 = vset.pattern.permute.xlu0 0
          %1458 = vperm.xlu0 %1457, %v1420
          %v1459 = vpop.permute.xlu0 %1458
          %1462 = vset.pattern.permute.xlu0 0
          %1463 = vperm.xlu0 %1462, %v1421
          %v1464 = vpop.permute.xlu0 %1463
          %1467 = vset.pattern.permute.xlu0 0
          %1468 = vperm.xlu0 %1467, %v1422
          %v1469 = vpop.permute.xlu0 %1468
          %1472 = vset.pattern.permute.xlu0 0
          %1473 = vperm.xlu0 %1472, %v1423
          %v1474 = vpop.permute.xlu0 %1473
          %1477 = vset.pattern.permute.xlu0 0
          %1478 = vperm.xlu0 %1477, %v1424
          %v1479 = vpop.permute.xlu0 %1478
          %1482 = vset.pattern.permute.xlu0 0
          %1483 = vperm.xlu0 %1482, %v1425
          %v1484 = vpop.permute.xlu0 %1483
          %1487 = vset.pattern.permute.xlu0 0
          %1488 = vperm.xlu0 %1487, %v1426
          %v1489 = vpop.permute.xlu0 %1488
          %1492 = vset.pattern.permute.xlu0 0
          %1493 = vperm.xlu0 %1492, %v1427
          %v1494 = vpop.permute.xlu0 %1493
          %1497 = vset.pattern.permute.xlu0 0
          %1498 = vperm.xlu0 %1497, %v1428
          %v1499 = vpop.permute.xlu0 %1498
          %1502 = vset.pattern.permute.xlu0 0
          %1503 = vperm.xlu0 %1502, %v1429
          %v1504 = vpop.permute.xlu0 %1503
          %1507 = vset.pattern.permute.xlu0 0
          %1508 = vperm.xlu0 %1507, %v1430
          %v1509 = vpop.permute.xlu0 %1508
          %v1511 = vsub.f32 %v1399, %v1434
          %v1512 = vsub.f32 %v1400, %v1439
          %v1513 = vsub.f32 %v1401, %v1444
          %v1514 = vsub.f32 %v1402, %v1449
          %v1515 = vsub.f32 %v1403, %v1454
          %v1516 = vsub.f32 %v1404, %v1459
          %v1517 = vsub.f32 %v1405, %v1464
          %v1518 = vsub.f32 %v1406, %v1469
          %v1519 = vsub.f32 %v1407, %v1474
          %v1520 = vsub.f32 %v1408, %v1479
          %v1521 = vsub.f32 %v1409, %v1484
          %v1522 = vsub.f32 %v1410, %v1489
          %v1523 = vsub.f32 %v1411, %v1494
          %v1524 = vsub.f32 %v1412, %v1499
          %v1525 = vsub.f32 %v1413, %v1504
          %v1526 = vsub.f32 %v1414, %v1509
          %v1527 = vmul.f32 %v1511, 1.442695
          %v1528 = vpow.pop %v1527
          %v1529 = vmul.f32 %v1512, 1.442695
          %v1530 = vpow.pop %v1529
          %v1531 = vmul.f32 %v1513, 1.442695
          %v1532 = vpow.pop %v1531
          %v1533 = vmul.f32 %v1514, 1.442695
          %v1534 = vpow.pop %v1533
          %v1535 = vmul.f32 %v1515, 1.442695
          %v1536 = vpow.pop %v1535
          %v1537 = vmul.f32 %v1516, 1.442695
          %v1538 = vpow.pop %v1537
          %v1539 = vmul.f32 %v1517, 1.442695
          %v1540 = vpow.pop %v1539
          %v1541 = vmul.f32 %v1518, 1.442695
          %v1542 = vpow.pop %v1541
          %v1543 = vmul.f32 %v1519, 1.442695
          %v1544 = vpow.pop %v1543
          %v1545 = vmul.f32 %v1520, 1.442695
          %v1546 = vpow.pop %v1545
          %v1547 = vmul.f32 %v1521, 1.442695
          %v1548 = vpow.pop %v1547
          %v1549 = vmul.f32 %v1522, 1.442695
          %v1550 = vpow.pop %v1549
          %v1551 = vmul.f32 %v1523, 1.442695
          %v1552 = vpow.pop %v1551
          %v1553 = vmul.f32 %v1524, 1.442695
          %v1554 = vpow.pop %v1553
          %v1555 = vmul.f32 %v1525, 1.442695
          %v1556 = vpow.pop %v1555
          %v1557 = vmul.f32 %v1526, 1.442695
          %v1558 = vpow.pop %v1557
          %v1559 = vmul.f32 %v1528, %v1290
          %v1560 = vmul.f32 %v1530, %v1295
          %v1561 = vmul.f32 %v1532, %v1300
          %v1562 = vmul.f32 %v1534, %v1305
          %v1563 = vmul.f32 %v1536, %v1310
          %v1564 = vmul.f32 %v1538, %v1315
          %v1565 = vmul.f32 %v1540, %v1320
          %v1566 = vmul.f32 %v1542, %v1325
          %v1567 = vmul.f32 %v1544, %v1330
          %v1568 = vmul.f32 %v1546, %v1335
          %v1569 = vmul.f32 %v1548, %v1340
          %v1570 = vmul.f32 %v1550, %v1345
          %v1571 = vmul.f32 %v1552, %v1350
          %v1572 = vmul.f32 %v1554, %v1355
          %v1573 = vmul.f32 %v1556, %v1360
          %v1574 = vmul.f32 %v1558, %v1365
          %v1575 = vpack.c.bf16 %v1560, %v1559
          %v1576 = vpack.c.bf16 %v1562, %v1561
          %v1577 = vpack.c.bf16 %v1564, %v1563
          %v1578 = vpack.c.bf16 %v1566, %v1565
          %v1579 = vpack.c.bf16 %v1568, %v1567
          %v1580 = vpack.c.bf16 %v1570, %v1569
          %v1581 = vpack.c.bf16 %v1572, %v1571
          %v1582 = vpack.c.bf16 %v1574, %v1573
          %v1591 = vunpack.c.l.b16 %v1575
          %v1592 = vunpack.c.h.b16 %v1575
          %v1593 = vunpack.c.l.b16 %v1576
          %v1594 = vunpack.c.h.b16 %v1576
          %v1595 = vunpack.c.l.b16 %v1577
          %v1596 = vunpack.c.h.b16 %v1577
          %v1597 = vunpack.c.l.b16 %v1578
          %v1598 = vunpack.c.h.b16 %v1578
          %v1599 = vunpack.c.l.b16 %v1579
          %v1600 = vunpack.c.h.b16 %v1579
          %v1601 = vunpack.c.l.b16 %v1580
          %v1602 = vunpack.c.h.b16 %v1580
          %v1603 = vunpack.c.l.b16 %v1581
          %v1604 = vunpack.c.h.b16 %v1581
          %v1605 = vunpack.c.l.b16 %v1582
          %v1606 = vunpack.c.h.b16 %v1582
          %v1607 = vpack.c.b16 %v1591, %v1591
          %v1608 = vpack.c.b16 %v1592, %v1592
          %v1609 = vpack.c.b16 %v1593, %v1593
          %v1610 = vpack.c.b16 %v1594, %v1594
          %v1611 = vpack.c.b16 %v1595, %v1595
          %v1612 = vpack.c.b16 %v1596, %v1596
          %v1613 = vpack.c.b16 %v1597, %v1597
          %v1614 = vpack.c.b16 %v1598, %v1598
          %v1615 = vpack.c.b16 %v1599, %v1599
          %v1616 = vpack.c.b16 %v1600, %v1600
          %v1617 = vpack.c.b16 %v1601, %v1601
          %v1618 = vpack.c.b16 %v1602, %v1602
          %v1619 = vpack.c.b16 %v1603, %v1603
          %v1620 = vpack.c.b16 %v1604, %v1604
          %v1621 = vpack.c.b16 %v1605, %v1605
          %v1622 = vpack.c.b16 %v1606, %v1606
          %1639 = vst [vmem:[%s270] sm:$0xf] %v1607
          %1640 = vst [vmem:[%s270 + $0x4] sm:$0xf] %v1608
          %1641 = vst [vmem:[%s270 + $0x8] sm:$0xf] %v1609
          %1642 = vst [vmem:[%s270 + $0xc] sm:$0xf] %v1610
          %1643 = vst [vmem:[%s270 + $0x10] sm:$0xf] %v1611
          %1644 = vst [vmem:[%s270 + $0x14] sm:$0xf] %v1612
          %1645 = vst [vmem:[%s270 + $0x18] sm:$0xf] %v1613
          %1646 = vst [vmem:[%s270 + $0x1c] sm:$0xf] %v1614
          %1647 = vst [vmem:[%s270 + $0x20] sm:$0xf] %v1615
          %1648 = vst [vmem:[%s270 + $0x24] sm:$0xf] %v1616
          %1649 = vst [vmem:[%s270 + $0x28] sm:$0xf] %v1617
          %1650 = vst [vmem:[%s270 + $0x2c] sm:$0xf] %v1618
          %1651 = vst [vmem:[%s270 + $0x30] sm:$0xf] %v1619
          %1652 = vst [vmem:[%s270 + $0x34] sm:$0xf] %v1620
          %1653 = vst [vmem:[%s270 + $0x38] sm:$0xf] %v1621
          %1654 = vst [vmem:[%s270 + $0x3c] sm:$0xf] %v1622
        $region44: #{tpu_custom_call.1} parent=27 // pred_fallthru
          _
        %s1655 = sand.u32 %s112, 1
        %s1656 = scalar_lea.sflag [#allocation8], %s1655
        %s1657 = sand.u32 %s112, 1
        %s1658 = smul.addr %s1657, 128
        %s1659 = scalar_lea.vmem [#allocation11], %s1658
        %s1660 = sand.u32 %s140, 1
        %s1661 = scalar_lea.sflag [#allocation13], %s1660
        %s1662 = sand.u32 %s140, 1
        %s1663 = smul.addr %s1662, 64
        %s1664 = scalar_lea.vmem [#allocation12], %s1663
        // Predicated region
        $region45: #{tpu_custom_call.1} parent=27 // pred_check
          %p1665 = pneg %p122
        $region46: #{tpu_custom_call.1} parent=27 // pred_check_branch
          %1667 = sbr.rel (%p1665) target = $region48
        $region47: #{tpu_custom_call.1} parent=27 // pred_region
          %s1668 = smul.u32 16, %s33
          %s1670 = ssub.s32 2048, 2048
          %1671 = vsyncadd %s1656, %s1670
          %s1672 = smul.addr %s32, 16
          %s1673 = sadd.s32 %s1668, %s1672
          %s1674 = smul.addr %s1673, 128
          %s1675 = scalar_lea.hbm %s2, %s1674
          %s1676 = sshll.u32 %s1659, 4
          %s1677 = int_to_ptr.vmem [resolvable:$true] %s1676
          %1682 = dma.vmem_to_hbm [thread:$0]  %s1677, 2048, %s1675, %s1656, 128, 128, 8
        $region48: #{tpu_custom_call.1} parent=27 // pred_fallthru
          _
        // Predicated region
        $region49: #{tpu_custom_call.1} parent=27 // pred_check
          %p1683 = pneg %p150
        $region50: #{tpu_custom_call.1} parent=27 // pred_check_branch
          %1685 = sbr.rel (%p1683) target = $region52
        $region51: #{tpu_custom_call.1} parent=27 // pred_region
          %s1686 = smul.u32 16, %s33
          %s1688 = ssub.s32 1024, 1024
          %1689 = vsyncadd %s1661, %s1688
          %s1690 = smul.addr %s32, 16
          %s1691 = sadd.s32 %s1686, %s1690
          %s1692 = smul.addr %s1691, 64
          %s1693 = scalar_lea.hbm %s3, %s1692
          %s1694 = sshll.u32 %s1664, 4
          %s1695 = int_to_ptr.vmem [resolvable:$true] %s1694
          %1700 = dma.vmem_to_hbm [thread:$0]  %s1695, 1024, %s1693, %s1661, 64, 64, 4
        $region52: #{tpu_custom_call.1} parent=27 // pred_fallthru
          _
      $region28: #{tpu_custom_call.1} parent=5 // pred_fallthru
        _
      %p1701 = scmp.le.s32.totalorder 2, %s22
      // Predicated region
      $region53: #{tpu_custom_call.1} parent=5 // pred_check
        %p1702 = pneg %p1701
      $region54: #{tpu_custom_call.1} parent=5 // pred_check_branch
        %1704 = sbr.rel (%p1702) target = $region56
      $region55: #{tpu_custom_call.1} parent=5 // pred_region
        %s1705 = ssub.s32 %s22, 2
        // Predicated region
        $region57: #{tpu_custom_call.1} parent=55 // pred_check
          %p1706 = pneg %p128
        $region58: #{tpu_custom_call.1} parent=55 // pred_check_branch
          %1708 = sbr.rel (%p1706) target = $region60
        $region59: #{tpu_custom_call.1} parent=55 // pred_region
          %s1709 = sand.u32 %s113, 1
          %s1710 = scalar_lea.sflag [#allocation8], %s1709
          %s1711 = sand.u32 %s113, 1
          %s1712 = smul.addr %s1711, 128
          %s1713 = scalar_lea.vmem [#allocation11], %s1712
          %1714 = dma.done %s1710, 2048
        $region60: #{tpu_custom_call.1} parent=55 // pred_fallthru
          _
        // Predicated region
        $region61: #{tpu_custom_call.1} parent=55 // pred_check
          %p1715 = pneg %p156
        $region62: #{tpu_custom_call.1} parent=55 // pred_check_branch
          %1717 = sbr.rel (%p1715) target = $region64
        $region63: #{tpu_custom_call.1} parent=55 // pred_region
          %s1718 = sand.u32 %s141, 1
          %s1719 = scalar_lea.sflag [#allocation13], %s1718
          %s1720 = sand.u32 %s141, 1
          %s1721 = smul.addr %s1720, 64
          %s1722 = scalar_lea.vmem [#allocation12], %s1721
          %1723 = dma.done %s1719, 1024
        $region64: #{tpu_custom_call.1} parent=55 // pred_fallthru
          _
      $region56: #{tpu_custom_call.1} parent=5 // pred_fallthru
        _
    $region6: #{tpu_custom_call.1} parent=1 // loop_footer
      %s26 = sadd.s32 1, %s22
    $region7: #{tpu_custom_call.1} parent=1 // loop_footer_branch
      %21 = sbr.rel target = $region3
    $region8: #{tpu_custom_call.1} parent=1 // loop_exit
      _
    %1724 = vsyncpa [#allocation7], 1
    %s1725 = scalar_lea.sflag [#allocation7], 1
    %1726 = vsyncpa %s1725, 1
    %1727 = vsyncpa [#allocation10], 1
    %s1728 = scalar_lea.sflag [#allocation10], 1
    %1729 = vsyncpa %s1728, 1
    %1730 = vsyncpa [#allocation8], 1
    %s1731 = scalar_lea.sflag [#allocation8], 1
    %1732 = vsyncpa %s1731, 1
    %1733 = vsyncpa [#allocation13], 1
    %s1734 = scalar_lea.sflag [#allocation13], 1
    %1735 = vsyncpa %s1734, 1

</llo_original>
